<compile_context>
chip_gen: v7x
topology: tpu7x:2x2x1
jax: 0.10.0
libtpu: 0.0.40
codegen_flags: <defaults>
</compile_context>

<pallas_src>
import jax
import jax.numpy as jnp
from jax.experimental import pallas as pl
from jax.experimental.pallas import tpu as pltpu


# ------------------------------ kernel body ------------------------------ #
def _simple_norm_kernel(x_ref, o_ref):
    x = x_ref[...]
    if jnp.issubdtype(x_ref.dtype, jnp.floating):
        # Keep true division (not * 0.0125) for bit parity with PyTorch.
        y = (x - jnp.asarray(40.0, x.dtype)) / jnp.asarray(80.0, x.dtype)
        o_ref[...] = y.astype(o_ref.dtype)
    else:
        # PyTorch parity for integer inputs: subtract in integer arithmetic,
        # convert to float only at the true division (fused cast, no extra
        # HBM pass in the wrapper).
        xf = (x - jnp.asarray(40, x.dtype)).astype(o_ref.dtype)
        o_ref[...] = xf / jnp.asarray(80.0, o_ref.dtype)


# ----------------------------- tiling policy ------------------------------ #
_SMALL_BYTES = 1 << 20  # below this, plain XLA (fused with neighbors) wins.

_BLOCK_TARGET_BYTES = {
    "v7x": 4 << 20,   # 3.2 TB/s HBM: amortize ~0.35 us/step overhead.
    "v6e": 4 << 20,   # 4 buffers x 4 MiB = 16 MiB, half the 32 MiB scoped default.
    "v5e": 2 << 20,   # stay well under v5e's 16 MiB scoped-VMEM default.
}


def _chip_kind() -> str:
    try:
        kind = jax.devices()[0].device_kind.lower()
    except Exception:  # pragma: no cover - defensive
        return "unknown"
    if "v7" in kind:
        return "v7x"
    if "v6" in kind:
        return "v6e"
    if "v5" in kind:
        return "v5e"
    return "unknown"


def _choose_cols(total: int):
    """Largest lane-dense column count (multiple of 128) dividing `total`."""
    for cols in (1024, 512, 2048, 4096, 256, 128):
        if total % cols == 0:
            return cols
    return None


def _block_rows(rows: int, cols: int, in_itemsize: int, out_itemsize: int,
                chip: str) -> int:
    # Sublane-packing multiple for the input dtype (f32:8, bf16:16, int8:32).
    # The f32 output multiple (8) divides all of these, so blocks stay legal.
    sub = {4: 8, 2: 16, 1: 32}.get(in_itemsize, 8)
    row_bytes = cols * max(in_itemsize, out_itemsize)
    target_bytes = _BLOCK_TARGET_BYTES.get(chip, 2 << 20)
    trows = max(sub, (target_bytes // row_bytes) // sub * sub)

    total_bytes = rows * row_bytes
    if total_bytes >= (4 << 20):
        # Guarantee pipeline depth: >= 4 grid steps per TensorCore
        # (8 blocks on 2-TC v7x), with a ~512 KiB floor per block.
        min_steps = 8 if chip == "v7x" else 4
        cap = max(sub, (rows // min_steps) // sub * sub)
        floor_rows = max(sub, ((512 << 10) // row_bytes) // sub * sub)
        trows = min(trows, max(cap, floor_rows))

    return min(trows, rows)


# -------------------------------- wrapper --------------------------------- #
def simple_norm(x: jax.Array, *, donate_input: bool = False) -> jax.Array:
    """Applies (x - 40) / 80 elementwise (Pallas TPU kernel for large inputs)."""
    orig_shape = x.shape
    out_dtype = x.dtype if jnp.issubdtype(x.dtype, jnp.floating) else jnp.float32

    def _fallback(v):
        if jnp.issubdtype(v.dtype, jnp.floating):
            return (v - jnp.asarray(40.0, v.dtype)) / jnp.asarray(80.0, v.dtype)
        return (v - jnp.asarray(40, v.dtype)).astype(out_dtype) / jnp.asarray(
            80.0, out_dtype)

    total = x.size
    in_itemsize = jnp.dtype(x.dtype).itemsize
    out_itemsize = jnp.dtype(out_dtype).itemsize

    # Tiny inputs: custom-call launch + DMA setup dwarfs the work; plain XLA
    # also fuses with producer/consumer for free.
    if total == 0 or total * max(in_itemsize, out_itemsize) < _SMALL_BYTES:
        return _fallback(x)

    cols = _choose_cols(total)
    if cols is None:
        # No lane-dense factorization without padding; padding+slicing would
        # add full-tensor HBM passes, so let XLA handle this (rare) case.
        return _fallback(x)

    rows = total // cols
    x2d = x.reshape(rows, cols)  # flatten-reshape: layout bitcast, no HBM copy

    chip = _chip_kind()
    trows = _block_rows(rows, cols, in_itemsize, out_itemsize, chip)
    grid = (pl.cdiv(rows, trows),)

    cost = pl.CostEstimate(
        flops=2 * total,                 # subtract + divide per element
        transcendentals=0,
        bytes_accessed=total * (in_itemsize + out_itemsize),
    )

    aliases = {0: 0} if (donate_input and x.dtype == out_dtype) else {}

    out2d = pl.pallas_call(
        _simple_norm_kernel,
        out_shape=jax.ShapeDtypeStruct((rows, cols), out_dtype),
        grid_spec=pltpu.PrefetchScalarGridSpec(
            num_scalar_prefetch=0,
            grid=grid,
            in_specs=[pl.BlockSpec((trows, cols), lambda i: (i, 0))],
            out_specs=pl.BlockSpec((trows, cols), lambda i: (i, 0)),
        ),
        compiler_params=pltpu.CompilerParams(
            dimension_semantics=("parallel",),
        ),
        cost_estimate=cost,
        input_output_aliases=aliases,
    )(x2d)

    return out2d.reshape(orig_shape)


# --------------------------------- driver --------------------------------- #
if __name__ == "__main__":
    key = jax.random.PRNGKey(0)
    k1, k2, k3 = jax.random.split(key, 3)

    # 1) Small spectrogram-sized NCHW input (typical module usage) -> fast
    #    jnp path (launching a custom call for 8 KiB would be pure overhead).
    x_small = jax.random.normal(k1, (2, 4, 16, 16), dtype=jnp.float32) * 50.0 + 40.0
    y_small = jax.block_until_ready(simple_norm(x_small))
    ref_small = (x_small - 40.0) / 80.0
    assert y_small.shape == x_small.shape and y_small.dtype == x_small.dtype
    assert jnp.allclose(y_small, ref_small, atol=1e-6, rtol=1e-6), "small mismatch"

    # 2) Larger float input that exercises the Pallas kernel with a multi-step
    #    (pipelined) grid.
    x_big = jax.random.normal(k2, (2, 4, 256, 1024), dtype=jnp.float32) * 50.0 + 40.0
    y_big = jax.block_until_ready(simple_norm(x_big))
    ref_big = (x_big - 40.0) / 80.0
    assert y_big.shape == x_big.shape and y_big.dtype == x_big.dtype
    assert jnp.allclose(y_big, ref_big, atol=1e-6, rtol=1e-6), "big mismatch"

    # 3) Integer input: int->float cast fused into the kernel, output float32.
    x_int = jax.random.randint(k3, (2, 4, 256, 1024), minval=0, maxval=1000,
                               dtype=jnp.int32)
    y_int = jax.block_until_ready(simple_norm(x_int))
    ref_int = (x_int - 40).astype(jnp.float32) / 80.0
    assert y_int.shape == x_int.shape and y_int.dtype == jnp.float32
    assert jnp.allclose(y_int, ref_int, atol=1e-6, rtol=1e-6), "int mismatch"

    print("KERNEL_OK")
</pallas_src>

<mosaic_0001>
module attributes {stable_mosaic.version = 11 : i64} {
  func.func @_simple_norm_kernel(%arg0: i32, %arg1: memref<512x1024xf32, #tpu.memory_space<vmem>>, %arg2: memref<512x1024xf32, #tpu.memory_space<vmem>>) attributes {dimension_semantics = [#tpu.dimension_semantics<parallel>], iteration_bounds = array<i64: 4>, scalar_prefetch = 0 : i64, scratch_operands = 0 : i64, tpu.core_type = #tpu.core_type<tc>, window_params = [{transform_indices = @transform_0, window_bounds = array<i64: 512, 1024>}, {transform_indices = @transform_1, window_bounds = array<i64: 512, 1024>}]} {
    %c0 = arith.constant 0 : index
    %c0_0 = arith.constant 0 : index
    %0 = vector.load %arg1[%c0, %c0_0] : memref<512x1024xf32, #tpu.memory_space<vmem>>, vector<512x1024xf32>
    %cst = arith.constant 4.000000e+01 : f32
    %1 = vector.broadcast %cst : f32 to vector<512x1024xf32>
    %2 = arith.subf %0, %1 : vector<512x1024xf32>
    %cst_1 = arith.constant 8.000000e+01 : f32
    %3 = vector.broadcast %cst_1 : f32 to vector<512x1024xf32>
    %4 = arith.divf %2, %3 : vector<512x1024xf32>
    %c0_2 = arith.constant 0 : index
    %c0_3 = arith.constant 0 : index
    %5 = vector.load %arg2[%c0_2, %c0_3] : memref<512x1024xf32, #tpu.memory_space<vmem>>, vector<512x1024xf32>
    tpu.vector_store %arg2[%c0_2, %c0_3], %4 {strides = array<i32>} : memref<512x1024xf32, #tpu.memory_space<vmem>>, vector<512x1024xf32>,
    return
  }
  func.func @transform_0(%arg0: i32) -> (i32, i32) {
    %c0_i32 = arith.constant 0 : i32
    %c0_i32_0 = arith.constant 0 : i32
    return %arg0, %c0_i32 : i32, i32
  }
  func.func @transform_1(%arg0: i32) -> (i32, i32) {
    %c0_i32 = arith.constant 0 : i32
    %c0_i32_0 = arith.constant 0 : i32
    return %arg0, %c0_i32 : i32, i32
  }
}

</mosaic_0001>

<llo_original>
// kernel: tpu_custom_call.1
$region0: #{tpu_custom_call.1}
  #allocation0 [shape = 'u32[]', space=smem, size = 0x4, offset = 0x4, fixed_abs, tag = 'smem constant byte address 0x4 - core index']
  #allocation1 [shape = 'u32[144,128]{1,0:T(1,128)}', space=vmem, size = 0x12000, scoped, tag = 'internal scratch']
  %s0 = inlined_call_operand.hbm [shape: f32[2048,1024], index: 0, kind: input, shape index: {}]
  %s1 = inlined_call_operand.hbm [shape: f32[2048,1024], index: 1, kind: output, shape index: {}]
  %s2 = sld [smem:[#allocation0]]
  $region41: #{tpu_custom_call.1} parent=0
    _
  %s4 = ssub.s32 1, %s2
  %s5 = scalar_select 0, %s4, %s2
  $region1: #{tpu_custom_call.1} parent=0
    #allocation2 [shape = 'u8[4194304]{0}', space=vmem, size = 0x400000, scoped, tag = 'input window, operand 0']
    #allocation3 [shape = 's32[2]{0}', space=sflag, size = 0x8, scoped, tag = 'scoped memory for tpu_custom_call.1']
    #allocation4 [shape = 's32[2]{0}', space=sflag, size = 0x8, scoped, tag = 'scoped memory for tpu_custom_call.1']
    #allocation5 [shape = 'u8[4194304]{0}', space=vmem, size = 0x400000, scoped, tag = 'output window, operand 0']
    %6 = vsyncpa [#allocation3], 0
    %s7 = scalar_lea.sflag [#allocation3], 1
    %8 = vsyncpa %s7, 0
    %9 = vsyncpa [#allocation4], 0
    %s10 = scalar_lea.sflag [#allocation4], 1
    %11 = vsyncpa %s10, 0
    loop: start=0, step=1, limit=6
    $region2: #{tpu_custom_call.1} parent=1 // loop_pre_header
      _
    $region3: #{tpu_custom_call.1} parent=1 // loop_header
      %s13 = sphi 0, %s17
      %p14 = scmp.ge.s32.totalorder %s13, 6
      %s23 = sphi 0, %s25
      %s26 = sphi 0, %s23
      %s27 = sphi 0, %s26
      %s43 = sphi 0, %s27
      %s49 = sphi 0, %s51
      %s52 = sphi 0, %s49
      %s53 = sphi 0, %s52
      %s69 = sphi 0, %s53
    $region4: #{tpu_custom_call.1} parent=1 // loop_header_branch
      %16 = sbr.rel (%p14) target = $region8
    $region5: #{tpu_custom_call.1} parent=1 // loop_body
      %s18 = ssub.s32 %s13, 1
      %s19 = ssub.s32 %s13, 2
      %s20 = sadd.s32 %s13, 1
      %s21 = ssub.s32 %s13, %s20
      %p22 = scmp.eq.s32.totalorder %s21, 0
      %s24 = sadd.s32 %s23, 1
      %s25 = scalar_select %p22, %s23, %s24
      %p28 = pneg %p22
      %p29 = scmp.eq.s32.totalorder %s13, 3
      %p30 = por %p28, %p29
      %p31 = scmp.ne.s32.totalorder %s23, %s26
      %p32 = scmp.eq.s32.totalorder %s13, 0
      %p33 = por %p31, %p32
      %p34 = scmp.ne.s32.totalorder %s23, %s26
      %p35 = scmp.eq.s32.totalorder %s18, 3
      %p36 = por %p34, %p35
      %p37 = scmp.ne.s32.totalorder %s26, %s27
      %p38 = scmp.eq.s32.totalorder %s18, 0
      %p39 = por %p37, %p38
      %p40 = scmp.ne.s32.totalorder %s26, %s27
      %p41 = scmp.eq.s32.totalorder %s19, 3
      %p42 = por %p40, %p41
      %p44 = scmp.ne.s32.totalorder %s27, %s43
      %p45 = scmp.eq.s32.totalorder %s19, 0
      %p46 = por %p44, %p45
      %s47 = ssub.s32 %s13, %s20
      %p48 = scmp.eq.s32.totalorder %s47, 0
      %s50 = sadd.s32 %s49, 1
      %s51 = scalar_select %p48, %s49, %s50
      %p54 = pneg %p48
      %p55 = scmp.eq.s32.totalorder %s13, 3
      %p56 = por %p54, %p55
      %p57 = scmp.ne.s32.totalorder %s49, %s52
      %p58 = scmp.eq.s32.totalorder %s13, 0
      %p59 = por %p57, %p58
      %p60 = scmp.ne.s32.totalorder %s49, %s52
      %p61 = scmp.eq.s32.totalorder %s18, 3
      %p62 = por %p60, %p61
      %p63 = scmp.ne.s32.totalorder %s52, %s53
      %p64 = scmp.eq.s32.totalorder %s18, 0
      %p65 = por %p63, %p64
      %p66 = scmp.ne.s32.totalorder %s52, %s53
      %p67 = scmp.eq.s32.totalorder %s19, 3
      %p68 = por %p66, %p67
      %p70 = scmp.ne.s32.totalorder %s53, %s69
      %p71 = scmp.eq.s32.totalorder %s19, 0
      %p72 = por %p70, %p71
      %p73 = scmp.le.s32.totalorder 1, %s13
      %p74 = scmp.lt.s32.totalorder %s13, 5
      %p75 = pnand %p73, %p74
      %p76 = pneg %p75
      // Predicated region
      $region9: #{tpu_custom_call.1} parent=5 // pred_check
        _
      $region10: #{tpu_custom_call.1} parent=5 // pred_check_branch
        %78 = sbr.rel (%p75) target = $region12
      $region11: #{tpu_custom_call.1} parent=5 // pred_region
        %s79 = ssub.s32 %s13, 1
      $region12: #{tpu_custom_call.1} parent=5 // pred_fallthru
        _
      %p80 = scmp.lt.s32.totalorder %s13, 4
      // Predicated region
      $region13: #{tpu_custom_call.1} parent=5 // pred_check
        %p81 = pneg %p80
      $region14: #{tpu_custom_call.1} parent=5 // pred_check_branch
        %83 = sbr.rel (%p81) target = $region16
      $region15: #{tpu_custom_call.1} parent=5 // pred_region
        // Predicated region
        $region17: #{tpu_custom_call.1} parent=15 // pred_check
          %p84 = pneg %p33
        $region18: #{tpu_custom_call.1} parent=15 // pred_check_branch
          %86 = sbr.rel (%p84) target = $region20
        $region19: #{tpu_custom_call.1} parent=15 // pred_region
          %s87 = sand.u32 %s23, 1
          %s88 = scalar_lea.sflag [#allocation3], %s87
          %s89 = sand.u32 %s23, 1
          %s90 = smul.addr %s89, 4096
          %s91 = scalar_lea.vmem [#allocation2], %s90
          %s92 = smul.u32 64, %s13
          %s94 = ssub.s32 65536, 65536
          %95 = vsyncadd %s88, %s94
          %s96 = smul.addr %s92, 8
          %s97 = smul.addr %s96, 128
          %s98 = scalar_lea.hbm %s0, %s97
          %s99 = sshll.u32 %s91, 4
          %s100 = int_to_ptr.vmem [resolvable:$true] %s99
          %105 = dma.hbm_to_vmem [thread:$0]  %s98, 65536, %s100, %s88, 1024, 1024, 64
        $region20: #{tpu_custom_call.1} parent=15 // pred_fallthru
          _
      $region16: #{tpu_custom_call.1} parent=5 // pred_fallthru
        _
      %p106 = scmp.le.s32.totalorder 1, %s13
      %p107 = scmp.lt.s32.totalorder %s13, 5
      %p108 = pnand %p106, %p107
      %p109 = pneg %p108
      // Predicated region
      $region21: #{tpu_custom_call.1} parent=5 // pred_check
        _
      $region22: #{tpu_custom_call.1} parent=5 // pred_check_branch
        %111 = sbr.rel (%p108) target = $region24
      $region23: #{tpu_custom_call.1} parent=5 // pred_region
        %s112 = ssub.s32 %s13, 1
        %s113 = sand.u32 %s26, 1
        %s114 = scalar_lea.sflag [#allocation3], %s113
        %s115 = sand.u32 %s26, 1
        %s116 = smul.addr %s115, 4096
        %s117 = scalar_lea.vmem [#allocation2], %s116
        // Predicated region
        $region25: #{tpu_custom_call.1} parent=23 // pred_check
          %p118 = pneg %p39
        $region26: #{tpu_custom_call.1} parent=23 // pred_check_branch
          %120 = sbr.rel (%p118) target = $region28
        $region27: #{tpu_custom_call.1} parent=23 // pred_region
          %121 = dma.done %s114, 65536
        $region28: #{tpu_custom_call.1} parent=23 // pred_fallthru
          _
        %s122 = sand.u32 %s26, 1
        %s123 = scalar_lea.sflag [#allocation3], %s122
        %s124 = sand.u32 %s26, 1
        %s125 = smul.addr %s124, 4096
        %s126 = scalar_lea.vmem [#allocation2], %s125
        %p127 = pneg %p39
        %p128 = pneg %p36
        %p129 = pneg %p65
        %p130 = pneg %p62
        %s131 = sand.u32 %s52, 1
        %s132 = scalar_lea.sflag [#allocation4], %s131
        %s133 = sand.u32 %s52, 1
        %s134 = smul.addr %s133, 4096
        %s135 = scalar_lea.vmem [#allocation5], %s134
        %s136 = smul.u32 64, %s18
        %s137 = smul.u32 64, %s18
        %v138 = vld [vmem:[%s117] sm:$0xff]
        %v139 = vld [vmem:[%s117 + $0x8] sm:$0xff]
        %v140 = vld [vmem:[%s117 + $0x10] sm:$0xff]
        %v141 = vld [vmem:[%s117 + $0x18] sm:$0xff]
        %v142 = vld [vmem:[%s117 + $0x20] sm:$0xff]
        %v143 = vld [vmem:[%s117 + $0x28] sm:$0xff]
        %v144 = vld [vmem:[%s117 + $0x30] sm:$0xff]
        %v145 = vld [vmem:[%s117 + $0x38] sm:$0xff]
        %v146 = vld [vmem:[%s117 + $0x40] sm:$0xff]
        %v147 = vld [vmem:[%s117 + $0x48] sm:$0xff]
        %v148 = vld [vmem:[%s117 + $0x50] sm:$0xff]
        %v149 = vld [vmem:[%s117 + $0x58] sm:$0xff]
        %v150 = vld [vmem:[%s117 + $0x60] sm:$0xff]
        %v151 = vld [vmem:[%s117 + $0x68] sm:$0xff]
        %v152 = vld [vmem:[%s117 + $0x70] sm:$0xff]
        %v153 = vld [vmem:[%s117 + $0x78] sm:$0xff]
        %v154 = vld [vmem:[%s117 + $0x80] sm:$0xff]
        %v155 = vld [vmem:[%s117 + $0x88] sm:$0xff]
        %v156 = vld [vmem:[%s117 + $0x90] sm:$0xff]
        %v157 = vld [vmem:[%s117 + $0x98] sm:$0xff]
        %v158 = vld [vmem:[%s117 + $0xa0] sm:$0xff]
        %v159 = vld [vmem:[%s117 + $0xa8] sm:$0xff]
        %v160 = vld [vmem:[%s117 + $0xb0] sm:$0xff]
        %v161 = vld [vmem:[%s117 + $0xb8] sm:$0xff]
        %v162 = vld [vmem:[%s117 + $0xc0] sm:$0xff]
        %v163 = vld [vmem:[%s117 + $0xc8] sm:$0xff]
        %v164 = vld [vmem:[%s117 + $0xd0] sm:$0xff]
        %v165 = vld [vmem:[%s117 + $0xd8] sm:$0xff]
        %v166 = vld [vmem:[%s117 + $0xe0] sm:$0xff]
        %v167 = vld [vmem:[%s117 + $0xe8] sm:$0xff]
        %v168 = vld [vmem:[%s117 + $0xf0] sm:$0xff]
        %v169 = vld [vmem:[%s117 + $0xf8] sm:$0xff]
        %v170 = vld [vmem:[%s117 + $0x100] sm:$0xff]
        %v171 = vld [vmem:[%s117 + $0x108] sm:$0xff]
        %v172 = vld [vmem:[%s117 + $0x110] sm:$0xff]
        %v173 = vld [vmem:[%s117 + $0x118] sm:$0xff]
        %v174 = vld [vmem:[%s117 + $0x120] sm:$0xff]
        %v175 = vld [vmem:[%s117 + $0x128] sm:$0xff]
        %v176 = vld [vmem:[%s117 + $0x130] sm:$0xff]
        %v177 = vld [vmem:[%s117 + $0x138] sm:$0xff]
        %v178 = vld [vmem:[%s117 + $0x140] sm:$0xff]
        %v179 = vld [vmem:[%s117 + $0x148] sm:$0xff]
        %v180 = vld [vmem:[%s117 + $0x150] sm:$0xff]
        %v181 = vld [vmem:[%s117 + $0x158] sm:$0xff]
        %v182 = vld [vmem:[%s117 + $0x160] sm:$0xff]
        %v183 = vld [vmem:[%s117 + $0x168] sm:$0xff]
        %v184 = vld [vmem:[%s117 + $0x170] sm:$0xff]
        %v185 = vld [vmem:[%s117 + $0x178] sm:$0xff]
        %v186 = vld [vmem:[%s117 + $0x180] sm:$0xff]
        %v187 = vld [vmem:[%s117 + $0x188] sm:$0xff]
        %v188 = vld [vmem:[%s117 + $0x190] sm:$0xff]
        %v189 = vld [vmem:[%s117 + $0x198] sm:$0xff]
        %v190 = vld [vmem:[%s117 + $0x1a0] sm:$0xff]
        %v191 = vld [vmem:[%s117 + $0x1a8] sm:$0xff]
        %v192 = vld [vmem:[%s117 + $0x1b0] sm:$0xff]
        %v193 = vld [vmem:[%s117 + $0x1b8] sm:$0xff]
        %v194 = vld [vmem:[%s117 + $0x1c0] sm:$0xff]
        %v195 = vld [vmem:[%s117 + $0x1c8] sm:$0xff]
        %v196 = vld [vmem:[%s117 + $0x1d0] sm:$0xff]
        %v197 = vld [vmem:[%s117 + $0x1d8] sm:$0xff]
        %v198 = vld [vmem:[%s117 + $0x1e0] sm:$0xff]
        %v199 = vld [vmem:[%s117 + $0x1e8] sm:$0xff]
        %v200 = vld [vmem:[%s117 + $0x1f0] sm:$0xff]
        %v201 = vld [vmem:[%s117 + $0x1f8] sm:$0xff]
        %v202 = vld [vmem:[%s117 + $0x200] sm:$0xff]
        %v203 = vld [vmem:[%s117 + $0x208] sm:$0xff]
        %v204 = vld [vmem:[%s117 + $0x210] sm:$0xff]
        %v205 = vld [vmem:[%s117 + $0x218] sm:$0xff]
        %v206 = vld [vmem:[%s117 + $0x220] sm:$0xff]
        %v207 = vld [vmem:[%s117 + $0x228] sm:$0xff]
        %v208 = vld [vmem:[%s117 + $0x230] sm:$0xff]
        %v209 = vld [vmem:[%s117 + $0x238] sm:$0xff]
        %v210 = vld [vmem:[%s117 + $0x240] sm:$0xff]
        %v211 = vld [vmem:[%s117 + $0x248] sm:$0xff]
        %v212 = vld [vmem:[%s117 + $0x250] sm:$0xff]
        %v213 = vld [vmem:[%s117 + $0x258] sm:$0xff]
        %v214 = vld [vmem:[%s117 + $0x260] sm:$0xff]
        %v215 = vld [vmem:[%s117 + $0x268] sm:$0xff]
        %v216 = vld [vmem:[%s117 + $0x270] sm:$0xff]
        %v217 = vld [vmem:[%s117 + $0x278] sm:$0xff]
        %v218 = vld [vmem:[%s117 + $0x280] sm:$0xff]
        %v219 = vld [vmem:[%s117 + $0x288] sm:$0xff]
        %v220 = vld [vmem:[%s117 + $0x290] sm:$0xff]
        %v221 = vld [vmem:[%s117 + $0x298] sm:$0xff]
        %v222 = vld [vmem:[%s117 + $0x2a0] sm:$0xff]
        %v223 = vld [vmem:[%s117 + $0x2a8] sm:$0xff]
        %v224 = vld [vmem:[%s117 + $0x2b0] sm:$0xff]
        %v225 = vld [vmem:[%s117 + $0x2b8] sm:$0xff]
        %v226 = vld [vmem:[%s117 + $0x2c0] sm:$0xff]
        %v227 = vld [vmem:[%s117 + $0x2c8] sm:$0xff]
        %v228 = vld [vmem:[%s117 + $0x2d0] sm:$0xff]
        %v229 = vld [vmem:[%s117 + $0x2d8] sm:$0xff]
        %v230 = vld [vmem:[%s117 + $0x2e0] sm:$0xff]
        %v231 = vld [vmem:[%s117 + $0x2e8] sm:$0xff]
        %v232 = vld [vmem:[%s117 + $0x2f0] sm:$0xff]
        %v233 = vld [vmem:[%s117 + $0x2f8] sm:$0xff]
        %v234 = vld [vmem:[%s117 + $0x300] sm:$0xff]
        %v235 = vld [vmem:[%s117 + $0x308] sm:$0xff]
        %v236 = vld [vmem:[%s117 + $0x310] sm:$0xff]
        %v237 = vld [vmem:[%s117 + $0x318] sm:$0xff]
        %v238 = vld [vmem:[%s117 + $0x320] sm:$0xff]
        %v239 = vld [vmem:[%s117 + $0x328] sm:$0xff]
        %v240 = vld [vmem:[%s117 + $0x330] sm:$0xff]
        %v241 = vld [vmem:[%s117 + $0x338] sm:$0xff]
        %v242 = vld [vmem:[%s117 + $0x340] sm:$0xff]
        %v243 = vld [vmem:[%s117 + $0x348] sm:$0xff]
        %v244 = vld [vmem:[%s117 + $0x350] sm:$0xff]
        %v245 = vld [vmem:[%s117 + $0x358] sm:$0xff]
        %v246 = vld [vmem:[%s117 + $0x360] sm:$0xff]
        %v247 = vld [vmem:[%s117 + $0x368] sm:$0xff]
        %v248 = vld [vmem:[%s117 + $0x370] sm:$0xff]
        %v249 = vld [vmem:[%s117 + $0x378] sm:$0xff]
        %v250 = vld [vmem:[%s117 + $0x380] sm:$0xff]
        %v251 = vld [vmem:[%s117 + $0x388] sm:$0xff]
        %v252 = vld [vmem:[%s117 + $0x390] sm:$0xff]
        %v253 = vld [vmem:[%s117 + $0x398] sm:$0xff]
        %v254 = vld [vmem:[%s117 + $0x3a0] sm:$0xff]
        %v255 = vld [vmem:[%s117 + $0x3a8] sm:$0xff]
        %v256 = vld [vmem:[%s117 + $0x3b0] sm:$0xff]
        %v257 = vld [vmem:[%s117 + $0x3b8] sm:$0xff]
        %v258 = vld [vmem:[%s117 + $0x3c0] sm:$0xff]
        %v259 = vld [vmem:[%s117 + $0x3c8] sm:$0xff]
        %v260 = vld [vmem:[%s117 + $0x3d0] sm:$0xff]
        %v261 = vld [vmem:[%s117 + $0x3d8] sm:$0xff]
        %v262 = vld [vmem:[%s117 + $0x3e0] sm:$0xff]
        %v263 = vld [vmem:[%s117 + $0x3e8] sm:$0xff]
        %v264 = vld [vmem:[%s117 + $0x3f0] sm:$0xff]
        %v265 = vld [vmem:[%s117 + $0x3f8] sm:$0xff]
        %v266 = vld [vmem:[%s117 + $0x400] sm:$0xff]
        %v267 = vld [vmem:[%s117 + $0x408] sm:$0xff]
        %v268 = vld [vmem:[%s117 + $0x410] sm:$0xff]
        %v269 = vld [vmem:[%s117 + $0x418] sm:$0xff]
        %v270 = vld [vmem:[%s117 + $0x420] sm:$0xff]
        %v271 = vld [vmem:[%s117 + $0x428] sm:$0xff]
        %v272 = vld [vmem:[%s117 + $0x430] sm:$0xff]
        %v273 = vld [vmem:[%s117 + $0x438] sm:$0xff]
        %v274 = vld [vmem:[%s117 + $0x440] sm:$0xff]
        %v275 = vld [vmem:[%s117 + $0x448] sm:$0xff]
        %v276 = vld [vmem:[%s117 + $0x450] sm:$0xff]
        %v277 = vld [vmem:[%s117 + $0x458] sm:$0xff]
        %v278 = vld [vmem:[%s117 + $0x460] sm:$0xff]
        %v279 = vld [vmem:[%s117 + $0x468] sm:$0xff]
        %v280 = vld [vmem:[%s117 + $0x470] sm:$0xff]
        %v281 = vld [vmem:[%s117 + $0x478] sm:$0xff]
        %v282 = vld [vmem:[%s117 + $0x480] sm:$0xff]
        %v283 = vld [vmem:[%s117 + $0x488] sm:$0xff]
        %v284 = vld [vmem:[%s117 + $0x490] sm:$0xff]
        %v285 = vld [vmem:[%s117 + $0x498] sm:$0xff]
        %v286 = vld [vmem:[%s117 + $0x4a0] sm:$0xff]
        %v287 = vld [vmem:[%s117 + $0x4a8] sm:$0xff]
        %v288 = vld [vmem:[%s117 + $0x4b0] sm:$0xff]
        %v289 = vld [vmem:[%s117 + $0x4b8] sm:$0xff]
        %v290 = vld [vmem:[%s117 + $0x4c0] sm:$0xff]
        %v291 = vld [vmem:[%s117 + $0x4c8] sm:$0xff]
        %v292 = vld [vmem:[%s117 + $0x4d0] sm:$0xff]
        %v293 = vld [vmem:[%s117 + $0x4d8] sm:$0xff]
        %v294 = vld [vmem:[%s117 + $0x4e0] sm:$0xff]
        %v295 = vld [vmem:[%s117 + $0x4e8] sm:$0xff]
        %v296 = vld [vmem:[%s117 + $0x4f0] sm:$0xff]
        %v297 = vld [vmem:[%s117 + $0x4f8] sm:$0xff]
        %v298 = vld [vmem:[%s117 + $0x500] sm:$0xff]
        %v299 = vld [vmem:[%s117 + $0x508] sm:$0xff]
        %v300 = vld [vmem:[%s117 + $0x510] sm:$0xff]
        %v301 = vld [vmem:[%s117 + $0x518] sm:$0xff]
        %v302 = vld [vmem:[%s117 + $0x520] sm:$0xff]
        %v303 = vld [vmem:[%s117 + $0x528] sm:$0xff]
        %v304 = vld [vmem:[%s117 + $0x530] sm:$0xff]
        %v305 = vld [vmem:[%s117 + $0x538] sm:$0xff]
        %v306 = vld [vmem:[%s117 + $0x540] sm:$0xff]
        %v307 = vld [vmem:[%s117 + $0x548] sm:$0xff]
        %v308 = vld [vmem:[%s117 + $0x550] sm:$0xff]
        %v309 = vld [vmem:[%s117 + $0x558] sm:$0xff]
        %v310 = vld [vmem:[%s117 + $0x560] sm:$0xff]
        %v311 = vld [vmem:[%s117 + $0x568] sm:$0xff]
        %v312 = vld [vmem:[%s117 + $0x570] sm:$0xff]
        %v313 = vld [vmem:[%s117 + $0x578] sm:$0xff]
        %v314 = vld [vmem:[%s117 + $0x580] sm:$0xff]
        %v315 = vld [vmem:[%s117 + $0x588] sm:$0xff]
        %v316 = vld [vmem:[%s117 + $0x590] sm:$0xff]
        %v317 = vld [vmem:[%s117 + $0x598] sm:$0xff]
        %v318 = vld [vmem:[%s117 + $0x5a0] sm:$0xff]
        %v319 = vld [vmem:[%s117 + $0x5a8] sm:$0xff]
        %v320 = vld [vmem:[%s117 + $0x5b0] sm:$0xff]
        %v321 = vld [vmem:[%s117 + $0x5b8] sm:$0xff]
        %v322 = vld [vmem:[%s117 + $0x5c0] sm:$0xff]
        %v323 = vld [vmem:[%s117 + $0x5c8] sm:$0xff]
        %v324 = vld [vmem:[%s117 + $0x5d0] sm:$0xff]
        %v325 = vld [vmem:[%s117 + $0x5d8] sm:$0xff]
        %v326 = vld [vmem:[%s117 + $0x5e0] sm:$0xff]
        %v327 = vld [vmem:[%s117 + $0x5e8] sm:$0xff]
        %v328 = vld [vmem:[%s117 + $0x5f0] sm:$0xff]
        %v329 = vld [vmem:[%s117 + $0x5f8] sm:$0xff]
        %v330 = vld [vmem:[%s117 + $0x600] sm:$0xff]
        %v331 = vld [vmem:[%s117 + $0x608] sm:$0xff]
        %v332 = vld [vmem:[%s117 + $0x610] sm:$0xff]
        %v333 = vld [vmem:[%s117 + $0x618] sm:$0xff]
        %v334 = vld [vmem:[%s117 + $0x620] sm:$0xff]
        %v335 = vld [vmem:[%s117 + $0x628] sm:$0xff]
        %v336 = vld [vmem:[%s117 + $0x630] sm:$0xff]
        %v337 = vld [vmem:[%s117 + $0x638] sm:$0xff]
        %v338 = vld [vmem:[%s117 + $0x640] sm:$0xff]
        %v339 = vld [vmem:[%s117 + $0x648] sm:$0xff]
        %v340 = vld [vmem:[%s117 + $0x650] sm:$0xff]
        %v341 = vld [vmem:[%s117 + $0x658] sm:$0xff]
        %v342 = vld [vmem:[%s117 + $0x660] sm:$0xff]
        %v343 = vld [vmem:[%s117 + $0x668] sm:$0xff]
        %v344 = vld [vmem:[%s117 + $0x670] sm:$0xff]
        %v345 = vld [vmem:[%s117 + $0x678] sm:$0xff]
        %v346 = vld [vmem:[%s117 + $0x680] sm:$0xff]
        %v347 = vld [vmem:[%s117 + $0x688] sm:$0xff]
        %v348 = vld [vmem:[%s117 + $0x690] sm:$0xff]
        %v349 = vld [vmem:[%s117 + $0x698] sm:$0xff]
        %v350 = vld [vmem:[%s117 + $0x6a0] sm:$0xff]
        %v351 = vld [vmem:[%s117 + $0x6a8] sm:$0xff]
        %v352 = vld [vmem:[%s117 + $0x6b0] sm:$0xff]
        %v353 = vld [vmem:[%s117 + $0x6b8] sm:$0xff]
        %v354 = vld [vmem:[%s117 + $0x6c0] sm:$0xff]
        %v355 = vld [vmem:[%s117 + $0x6c8] sm:$0xff]
        %v356 = vld [vmem:[%s117 + $0x6d0] sm:$0xff]
        %v357 = vld [vmem:[%s117 + $0x6d8] sm:$0xff]
        %v358 = vld [vmem:[%s117 + $0x6e0] sm:$0xff]
        %v359 = vld [vmem:[%s117 + $0x6e8] sm:$0xff]
        %v360 = vld [vmem:[%s117 + $0x6f0] sm:$0xff]
        %v361 = vld [vmem:[%s117 + $0x6f8] sm:$0xff]
        %v362 = vld [vmem:[%s117 + $0x700] sm:$0xff]
        %v363 = vld [vmem:[%s117 + $0x708] sm:$0xff]
        %v364 = vld [vmem:[%s117 + $0x710] sm:$0xff]
        %v365 = vld [vmem:[%s117 + $0x718] sm:$0xff]
        %v366 = vld [vmem:[%s117 + $0x720] sm:$0xff]
        %v367 = vld [vmem:[%s117 + $0x728] sm:$0xff]
        %v368 = vld [vmem:[%s117 + $0x730] sm:$0xff]
        %v369 = vld [vmem:[%s117 + $0x738] sm:$0xff]
        %v370 = vld [vmem:[%s117 + $0x740] sm:$0xff]
        %v371 = vld [vmem:[%s117 + $0x748] sm:$0xff]
        %v372 = vld [vmem:[%s117 + $0x750] sm:$0xff]
        %v373 = vld [vmem:[%s117 + $0x758] sm:$0xff]
        %v374 = vld [vmem:[%s117 + $0x760] sm:$0xff]
        %v375 = vld [vmem:[%s117 + $0x768] sm:$0xff]
        %v376 = vld [vmem:[%s117 + $0x770] sm:$0xff]
        %v377 = vld [vmem:[%s117 + $0x778] sm:$0xff]
        %v378 = vld [vmem:[%s117 + $0x780] sm:$0xff]
        %v379 = vld [vmem:[%s117 + $0x788] sm:$0xff]
        %v380 = vld [vmem:[%s117 + $0x790] sm:$0xff]
        %v381 = vld [vmem:[%s117 + $0x798] sm:$0xff]
        %v382 = vld [vmem:[%s117 + $0x7a0] sm:$0xff]
        %v383 = vld [vmem:[%s117 + $0x7a8] sm:$0xff]
        %v384 = vld [vmem:[%s117 + $0x7b0] sm:$0xff]
        %v385 = vld [vmem:[%s117 + $0x7b8] sm:$0xff]
        %v386 = vld [vmem:[%s117 + $0x7c0] sm:$0xff]
        %v387 = vld [vmem:[%s117 + $0x7c8] sm:$0xff]
        %v388 = vld [vmem:[%s117 + $0x7d0] sm:$0xff]
        %v389 = vld [vmem:[%s117 + $0x7d8] sm:$0xff]
        %v390 = vld [vmem:[%s117 + $0x7e0] sm:$0xff]
        %v391 = vld [vmem:[%s117 + $0x7e8] sm:$0xff]
        %v392 = vld [vmem:[%s117 + $0x7f0] sm:$0xff]
        %v393 = vld [vmem:[%s117 + $0x7f8] sm:$0xff]
        %v394 = vld [vmem:[%s117 + $0x800] sm:$0xff]
        %v395 = vld [vmem:[%s117 + $0x808] sm:$0xff]
        %v396 = vld [vmem:[%s117 + $0x810] sm:$0xff]
        %v397 = vld [vmem:[%s117 + $0x818] sm:$0xff]
        %v398 = vld [vmem:[%s117 + $0x820] sm:$0xff]
        %v399 = vld [vmem:[%s117 + $0x828] sm:$0xff]
        %v400 = vld [vmem:[%s117 + $0x830] sm:$0xff]
        %v401 = vld [vmem:[%s117 + $0x838] sm:$0xff]
        %v402 = vld [vmem:[%s117 + $0x840] sm:$0xff]
        %v403 = vld [vmem:[%s117 + $0x848] sm:$0xff]
        %v404 = vld [vmem:[%s117 + $0x850] sm:$0xff]
        %v405 = vld [vmem:[%s117 + $0x858] sm:$0xff]
        %v406 = vld [vmem:[%s117 + $0x860] sm:$0xff]
        %v407 = vld [vmem:[%s117 + $0x868] sm:$0xff]
        %v408 = vld [vmem:[%s117 + $0x870] sm:$0xff]
        %v409 = vld [vmem:[%s117 + $0x878] sm:$0xff]
        %v410 = vld [vmem:[%s117 + $0x880] sm:$0xff]
        %v411 = vld [vmem:[%s117 + $0x888] sm:$0xff]
        %v412 = vld [vmem:[%s117 + $0x890] sm:$0xff]
        %v413 = vld [vmem:[%s117 + $0x898] sm:$0xff]
        %v414 = vld [vmem:[%s117 + $0x8a0] sm:$0xff]
        %v415 = vld [vmem:[%s117 + $0x8a8] sm:$0xff]
        %v416 = vld [vmem:[%s117 + $0x8b0] sm:$0xff]
        %v417 = vld [vmem:[%s117 + $0x8b8] sm:$0xff]
        %v418 = vld [vmem:[%s117 + $0x8c0] sm:$0xff]
        %v419 = vld [vmem:[%s117 + $0x8c8] sm:$0xff]
        %v420 = vld [vmem:[%s117 + $0x8d0] sm:$0xff]
        %v421 = vld [vmem:[%s117 + $0x8d8] sm:$0xff]
        %v422 = vld [vmem:[%s117 + $0x8e0] sm:$0xff]
        %v423 = vld [vmem:[%s117 + $0x8e8] sm:$0xff]
        %v424 = vld [vmem:[%s117 + $0x8f0] sm:$0xff]
        %v425 = vld [vmem:[%s117 + $0x8f8] sm:$0xff]
        %v426 = vld [vmem:[%s117 + $0x900] sm:$0xff]
        %v427 = vld [vmem:[%s117 + $0x908] sm:$0xff]
        %v428 = vld [vmem:[%s117 + $0x910] sm:$0xff]
        %v429 = vld [vmem:[%s117 + $0x918] sm:$0xff]
        %v430 = vld [vmem:[%s117 + $0x920] sm:$0xff]
        %v431 = vld [vmem:[%s117 + $0x928] sm:$0xff]
        %v432 = vld [vmem:[%s117 + $0x930] sm:$0xff]
        %v433 = vld [vmem:[%s117 + $0x938] sm:$0xff]
        %v434 = vld [vmem:[%s117 + $0x940] sm:$0xff]
        %v435 = vld [vmem:[%s117 + $0x948] sm:$0xff]
        %v436 = vld [vmem:[%s117 + $0x950] sm:$0xff]
        %v437 = vld [vmem:[%s117 + $0x958] sm:$0xff]
        %v438 = vld [vmem:[%s117 + $0x960] sm:$0xff]
        %v439 = vld [vmem:[%s117 + $0x968] sm:$0xff]
        %v440 = vld [vmem:[%s117 + $0x970] sm:$0xff]
        %v441 = vld [vmem:[%s117 + $0x978] sm:$0xff]
        %v442 = vld [vmem:[%s117 + $0x980] sm:$0xff]
        %v443 = vld [vmem:[%s117 + $0x988] sm:$0xff]
        %v444 = vld [vmem:[%s117 + $0x990] sm:$0xff]
        %v445 = vld [vmem:[%s117 + $0x998] sm:$0xff]
        %v446 = vld [vmem:[%s117 + $0x9a0] sm:$0xff]
        %v447 = vld [vmem:[%s117 + $0x9a8] sm:$0xff]
        %v448 = vld [vmem:[%s117 + $0x9b0] sm:$0xff]
        %v449 = vld [vmem:[%s117 + $0x9b8] sm:$0xff]
        %v450 = vld [vmem:[%s117 + $0x9c0] sm:$0xff]
        %v451 = vld [vmem:[%s117 + $0x9c8] sm:$0xff]
        %v452 = vld [vmem:[%s117 + $0x9d0] sm:$0xff]
        %v453 = vld [vmem:[%s117 + $0x9d8] sm:$0xff]
        %v454 = vld [vmem:[%s117 + $0x9e0] sm:$0xff]
        %v455 = vld [vmem:[%s117 + $0x9e8] sm:$0xff]
        %v456 = vld [vmem:[%s117 + $0x9f0] sm:$0xff]
        %v457 = vld [vmem:[%s117 + $0x9f8] sm:$0xff]
        %v458 = vld [vmem:[%s117 + $0xa00] sm:$0xff]
        %v459 = vld [vmem:[%s117 + $0xa08] sm:$0xff]
        %v460 = vld [vmem:[%s117 + $0xa10] sm:$0xff]
        %v461 = vld [vmem:[%s117 + $0xa18] sm:$0xff]
        %v462 = vld [vmem:[%s117 + $0xa20] sm:$0xff]
        %v463 = vld [vmem:[%s117 + $0xa28] sm:$0xff]
        %v464 = vld [vmem:[%s117 + $0xa30] sm:$0xff]
        %v465 = vld [vmem:[%s117 + $0xa38] sm:$0xff]
        %v466 = vld [vmem:[%s117 + $0xa40] sm:$0xff]
        %v467 = vld [vmem:[%s117 + $0xa48] sm:$0xff]
        %v468 = vld [vmem:[%s117 + $0xa50] sm:$0xff]
        %v469 = vld [vmem:[%s117 + $0xa58] sm:$0xff]
        %v470 = vld [vmem:[%s117 + $0xa60] sm:$0xff]
        %v471 = vld [vmem:[%s117 + $0xa68] sm:$0xff]
        %v472 = vld [vmem:[%s117 + $0xa70] sm:$0xff]
        %v473 = vld [vmem:[%s117 + $0xa78] sm:$0xff]
        %v474 = vld [vmem:[%s117 + $0xa80] sm:$0xff]
        %v475 = vld [vmem:[%s117 + $0xa88] sm:$0xff]
        %v476 = vld [vmem:[%s117 + $0xa90] sm:$0xff]
        %v477 = vld [vmem:[%s117 + $0xa98] sm:$0xff]
        %v478 = vld [vmem:[%s117 + $0xaa0] sm:$0xff]
        %v479 = vld [vmem:[%s117 + $0xaa8] sm:$0xff]
        %v480 = vld [vmem:[%s117 + $0xab0] sm:$0xff]
        %v481 = vld [vmem:[%s117 + $0xab8] sm:$0xff]
        %v482 = vld [vmem:[%s117 + $0xac0] sm:$0xff]
        %v483 = vld [vmem:[%s117 + $0xac8] sm:$0xff]
        %v484 = vld [vmem:[%s117 + $0xad0] sm:$0xff]
        %v485 = vld [vmem:[%s117 + $0xad8] sm:$0xff]
        %v486 = vld [vmem:[%s117 + $0xae0] sm:$0xff]
        %v487 = vld [vmem:[%s117 + $0xae8] sm:$0xff]
        %v488 = vld [vmem:[%s117 + $0xaf0] sm:$0xff]
        %v489 = vld [vmem:[%s117 + $0xaf8] sm:$0xff]
        %v490 = vld [vmem:[%s117 + $0xb00] sm:$0xff]
        %v491 = vld [vmem:[%s117 + $0xb08] sm:$0xff]
        %v492 = vld [vmem:[%s117 + $0xb10] sm:$0xff]
        %v493 = vld [vmem:[%s117 + $0xb18] sm:$0xff]
        %v494 = vld [vmem:[%s117 + $0xb20] sm:$0xff]
        %v495 = vld [vmem:[%s117 + $0xb28] sm:$0xff]
        %v496 = vld [vmem:[%s117 + $0xb30] sm:$0xff]
        %v497 = vld [vmem:[%s117 + $0xb38] sm:$0xff]
        %v498 = vld [vmem:[%s117 + $0xb40] sm:$0xff]
        %v499 = vld [vmem:[%s117 + $0xb48] sm:$0xff]
        %v500 = vld [vmem:[%s117 + $0xb50] sm:$0xff]
        %v501 = vld [vmem:[%s117 + $0xb58] sm:$0xff]
        %v502 = vld [vmem:[%s117 + $0xb60] sm:$0xff]
        %v503 = vld [vmem:[%s117 + $0xb68] sm:$0xff]
        %v504 = vld [vmem:[%s117 + $0xb70] sm:$0xff]
        %v505 = vld [vmem:[%s117 + $0xb78] sm:$0xff]
        %v506 = vld [vmem:[%s117 + $0xb80] sm:$0xff]
        %v507 = vld [vmem:[%s117 + $0xb88] sm:$0xff]
        %v508 = vld [vmem:[%s117 + $0xb90] sm:$0xff]
        %v509 = vld [vmem:[%s117 + $0xb98] sm:$0xff]
        %v510 = vld [vmem:[%s117 + $0xba0] sm:$0xff]
        %v511 = vld [vmem:[%s117 + $0xba8] sm:$0xff]
        %v512 = vld [vmem:[%s117 + $0xbb0] sm:$0xff]
        %v513 = vld [vmem:[%s117 + $0xbb8] sm:$0xff]
        %v514 = vld [vmem:[%s117 + $0xbc0] sm:$0xff]
        %v515 = vld [vmem:[%s117 + $0xbc8] sm:$0xff]
        %v516 = vld [vmem:[%s117 + $0xbd0] sm:$0xff]
        %v517 = vld [vmem:[%s117 + $0xbd8] sm:$0xff]
        %v518 = vld [vmem:[%s117 + $0xbe0] sm:$0xff]
        %v519 = vld [vmem:[%s117 + $0xbe8] sm:$0xff]
        %v520 = vld [vmem:[%s117 + $0xbf0] sm:$0xff]
        %v521 = vld [vmem:[%s117 + $0xbf8] sm:$0xff]
        %v522 = vld [vmem:[%s117 + $0xc00] sm:$0xff]
        %v523 = vld [vmem:[%s117 + $0xc08] sm:$0xff]
        %v524 = vld [vmem:[%s117 + $0xc10] sm:$0xff]
        %v525 = vld [vmem:[%s117 + $0xc18] sm:$0xff]
        %v526 = vld [vmem:[%s117 + $0xc20] sm:$0xff]
        %v527 = vld [vmem:[%s117 + $0xc28] sm:$0xff]
        %v528 = vld [vmem:[%s117 + $0xc30] sm:$0xff]
        %v529 = vld [vmem:[%s117 + $0xc38] sm:$0xff]
        %v530 = vld [vmem:[%s117 + $0xc40] sm:$0xff]
        %v531 = vld [vmem:[%s117 + $0xc48] sm:$0xff]
        %v532 = vld [vmem:[%s117 + $0xc50] sm:$0xff]
        %v533 = vld [vmem:[%s117 + $0xc58] sm:$0xff]
        %v534 = vld [vmem:[%s117 + $0xc60] sm:$0xff]
        %v535 = vld [vmem:[%s117 + $0xc68] sm:$0xff]
        %v536 = vld [vmem:[%s117 + $0xc70] sm:$0xff]
        %v537 = vld [vmem:[%s117 + $0xc78] sm:$0xff]
        %v538 = vld [vmem:[%s117 + $0xc80] sm:$0xff]
        %v539 = vld [vmem:[%s117 + $0xc88] sm:$0xff]
        %v540 = vld [vmem:[%s117 + $0xc90] sm:$0xff]
        %v541 = vld [vmem:[%s117 + $0xc98] sm:$0xff]
        %v542 = vld [vmem:[%s117 + $0xca0] sm:$0xff]
        %v543 = vld [vmem:[%s117 + $0xca8] sm:$0xff]
        %v544 = vld [vmem:[%s117 + $0xcb0] sm:$0xff]
        %v545 = vld [vmem:[%s117 + $0xcb8] sm:$0xff]
        %v546 = vld [vmem:[%s117 + $0xcc0] sm:$0xff]
        %v547 = vld [vmem:[%s117 + $0xcc8] sm:$0xff]
        %v548 = vld [vmem:[%s117 + $0xcd0] sm:$0xff]
        %v549 = vld [vmem:[%s117 + $0xcd8] sm:$0xff]
        %v550 = vld [vmem:[%s117 + $0xce0] sm:$0xff]
        %v551 = vld [vmem:[%s117 + $0xce8] sm:$0xff]
        %v552 = vld [vmem:[%s117 + $0xcf0] sm:$0xff]
        %v553 = vld [vmem:[%s117 + $0xcf8] sm:$0xff]
        %v554 = vld [vmem:[%s117 + $0xd00] sm:$0xff]
        %v555 = vld [vmem:[%s117 + $0xd08] sm:$0xff]
        %v556 = vld [vmem:[%s117 + $0xd10] sm:$0xff]
        %v557 = vld [vmem:[%s117 + $0xd18] sm:$0xff]
        %v558 = vld [vmem:[%s117 + $0xd20] sm:$0xff]
        %v559 = vld [vmem:[%s117 + $0xd28] sm:$0xff]
        %v560 = vld [vmem:[%s117 + $0xd30] sm:$0xff]
        %v561 = vld [vmem:[%s117 + $0xd38] sm:$0xff]
        %v562 = vld [vmem:[%s117 + $0xd40] sm:$0xff]
        %v563 = vld [vmem:[%s117 + $0xd48] sm:$0xff]
        %v564 = vld [vmem:[%s117 + $0xd50] sm:$0xff]
        %v565 = vld [vmem:[%s117 + $0xd58] sm:$0xff]
        %v566 = vld [vmem:[%s117 + $0xd60] sm:$0xff]
        %v567 = vld [vmem:[%s117 + $0xd68] sm:$0xff]
        %v568 = vld [vmem:[%s117 + $0xd70] sm:$0xff]
        %v569 = vld [vmem:[%s117 + $0xd78] sm:$0xff]
        %v570 = vld [vmem:[%s117 + $0xd80] sm:$0xff]
        %v571 = vld [vmem:[%s117 + $0xd88] sm:$0xff]
        %v572 = vld [vmem:[%s117 + $0xd90] sm:$0xff]
        %v573 = vld [vmem:[%s117 + $0xd98] sm:$0xff]
        %v574 = vld [vmem:[%s117 + $0xda0] sm:$0xff]
        %v575 = vld [vmem:[%s117 + $0xda8] sm:$0xff]
        %v576 = vld [vmem:[%s117 + $0xdb0] sm:$0xff]
        %v577 = vld [vmem:[%s117 + $0xdb8] sm:$0xff]
        %v578 = vld [vmem:[%s117 + $0xdc0] sm:$0xff]
        %v579 = vld [vmem:[%s117 + $0xdc8] sm:$0xff]
        %v580 = vld [vmem:[%s117 + $0xdd0] sm:$0xff]
        %v581 = vld [vmem:[%s117 + $0xdd8] sm:$0xff]
        %v582 = vld [vmem:[%s117 + $0xde0] sm:$0xff]
        %v583 = vld [vmem:[%s117 + $0xde8] sm:$0xff]
        %v584 = vld [vmem:[%s117 + $0xdf0] sm:$0xff]
        %v585 = vld [vmem:[%s117 + $0xdf8] sm:$0xff]
        %v586 = vld [vmem:[%s117 + $0xe00] sm:$0xff]
        %v587 = vld [vmem:[%s117 + $0xe08] sm:$0xff]
        %v588 = vld [vmem:[%s117 + $0xe10] sm:$0xff]
        %v589 = vld [vmem:[%s117 + $0xe18] sm:$0xff]
        %v590 = vld [vmem:[%s117 + $0xe20] sm:$0xff]
        %v591 = vld [vmem:[%s117 + $0xe28] sm:$0xff]
        %v592 = vld [vmem:[%s117 + $0xe30] sm:$0xff]
        %v593 = vld [vmem:[%s117 + $0xe38] sm:$0xff]
        %v594 = vld [vmem:[%s117 + $0xe40] sm:$0xff]
        %v595 = vld [vmem:[%s117 + $0xe48] sm:$0xff]
        %v596 = vld [vmem:[%s117 + $0xe50] sm:$0xff]
        %v597 = vld [vmem:[%s117 + $0xe58] sm:$0xff]
        %v598 = vld [vmem:[%s117 + $0xe60] sm:$0xff]
        %v599 = vld [vmem:[%s117 + $0xe68] sm:$0xff]
        %v600 = vld [vmem:[%s117 + $0xe70] sm:$0xff]
        %v601 = vld [vmem:[%s117 + $0xe78] sm:$0xff]
        %v602 = vld [vmem:[%s117 + $0xe80] sm:$0xff]
        %v603 = vld [vmem:[%s117 + $0xe88] sm:$0xff]
        %v604 = vld [vmem:[%s117 + $0xe90] sm:$0xff]
        %v605 = vld [vmem:[%s117 + $0xe98] sm:$0xff]
        %v606 = vld [vmem:[%s117 + $0xea0] sm:$0xff]
        %v607 = vld [vmem:[%s117 + $0xea8] sm:$0xff]
        %v608 = vld [vmem:[%s117 + $0xeb0] sm:$0xff]
        %v609 = vld [vmem:[%s117 + $0xeb8] sm:$0xff]
        %v610 = vld [vmem:[%s117 + $0xec0] sm:$0xff]
        %v611 = vld [vmem:[%s117 + $0xec8] sm:$0xff]
        %v612 = vld [vmem:[%s117 + $0xed0] sm:$0xff]
        %v613 = vld [vmem:[%s117 + $0xed8] sm:$0xff]
        %v614 = vld [vmem:[%s117 + $0xee0] sm:$0xff]
        %v615 = vld [vmem:[%s117 + $0xee8] sm:$0xff]
        %v616 = vld [vmem:[%s117 + $0xef0] sm:$0xff]
        %v617 = vld [vmem:[%s117 + $0xef8] sm:$0xff]
        %v618 = vld [vmem:[%s117 + $0xf00] sm:$0xff]
        %v619 = vld [vmem:[%s117 + $0xf08] sm:$0xff]
        %v620 = vld [vmem:[%s117 + $0xf10] sm:$0xff]
        %v621 = vld [vmem:[%s117 + $0xf18] sm:$0xff]
        %v622 = vld [vmem:[%s117 + $0xf20] sm:$0xff]
        %v623 = vld [vmem:[%s117 + $0xf28] sm:$0xff]
        %v624 = vld [vmem:[%s117 + $0xf30] sm:$0xff]
        %v625 = vld [vmem:[%s117 + $0xf38] sm:$0xff]
        %v626 = vld [vmem:[%s117 + $0xf40] sm:$0xff]
        %v627 = vld [vmem:[%s117 + $0xf48] sm:$0xff]
        %v628 = vld [vmem:[%s117 + $0xf50] sm:$0xff]
        %v629 = vld [vmem:[%s117 + $0xf58] sm:$0xff]
        %v630 = vld [vmem:[%s117 + $0xf60] sm:$0xff]
        %v631 = vld [vmem:[%s117 + $0xf68] sm:$0xff]
        %v632 = vld [vmem:[%s117 + $0xf70] sm:$0xff]
        %v633 = vld [vmem:[%s117 + $0xf78] sm:$0xff]
        %v634 = vld [vmem:[%s117 + $0xf80] sm:$0xff]
        %v635 = vld [vmem:[%s117 + $0xf88] sm:$0xff]
        %v636 = vld [vmem:[%s117 + $0xf90] sm:$0xff]
        %v637 = vld [vmem:[%s117 + $0xf98] sm:$0xff]
        %v638 = vld [vmem:[%s117 + $0xfa0] sm:$0xff]
        %v639 = vld [vmem:[%s117 + $0xfa8] sm:$0xff]
        %v640 = vld [vmem:[%s117 + $0xfb0] sm:$0xff]
        %v641 = vld [vmem:[%s117 + $0xfb8] sm:$0xff]
        %v642 = vld [vmem:[%s117 + $0xfc0] sm:$0xff]
        %v643 = vld [vmem:[%s117 + $0xfc8] sm:$0xff]
        %v644 = vld [vmem:[%s117 + $0xfd0] sm:$0xff]
        %v645 = vld [vmem:[%s117 + $0xfd8] sm:$0xff]
        %v646 = vld [vmem:[%s117 + $0xfe0] sm:$0xff]
        %v647 = vld [vmem:[%s117 + $0xfe8] sm:$0xff]
        %v648 = vld [vmem:[%s117 + $0xff0] sm:$0xff]
        %v649 = vld [vmem:[%s117 + $0xff8] sm:$0xff]
        %v650 = vsub.f32 %v138, 40.0
        %v651 = vsub.f32 %v139, 40.0
        %v652 = vsub.f32 %v140, 40.0
        %v653 = vsub.f32 %v141, 40.0
        %v654 = vsub.f32 %v142, 40.0
        %v655 = vsub.f32 %v143, 40.0
        %v656 = vsub.f32 %v144, 40.0
        %v657 = vsub.f32 %v145, 40.0
        %v658 = vsub.f32 %v146, 40.0
        %v659 = vsub.f32 %v147, 40.0
        %v660 = vsub.f32 %v148, 40.0
        %v661 = vsub.f32 %v149, 40.0
        %v662 = vsub.f32 %v150, 40.0
        %v663 = vsub.f32 %v151, 40.0
        %v664 = vsub.f32 %v152, 40.0
        %v665 = vsub.f32 %v153, 40.0
        %v666 = vsub.f32 %v154, 40.0
        %v667 = vsub.f32 %v155, 40.0
        %v668 = vsub.f32 %v156, 40.0
        %v669 = vsub.f32 %v157, 40.0
        %v670 = vsub.f32 %v158, 40.0
        %v671 = vsub.f32 %v159, 40.0
        %v672 = vsub.f32 %v160, 40.0
        %v673 = vsub.f32 %v161, 40.0
        %v674 = vsub.f32 %v162, 40.0
        %v675 = vsub.f32 %v163, 40.0
        %v676 = vsub.f32 %v164, 40.0
        %v677 = vsub.f32 %v165, 40.0
        %v678 = vsub.f32 %v166, 40.0
        %v679 = vsub.f32 %v167, 40.0
        %v680 = vsub.f32 %v168, 40.0
        %v681 = vsub.f32 %v169, 40.0
        %v682 = vsub.f32 %v170, 40.0
        %v683 = vsub.f32 %v171, 40.0
        %v684 = vsub.f32 %v172, 40.0
        %v685 = vsub.f32 %v173, 40.0
        %v686 = vsub.f32 %v174, 40.0
        %v687 = vsub.f32 %v175, 40.0
        %v688 = vsub.f32 %v176, 40.0
        %v689 = vsub.f32 %v177, 40.0
        %v690 = vsub.f32 %v178, 40.0
        %v691 = vsub.f32 %v179, 40.0
        %v692 = vsub.f32 %v180, 40.0
        %v693 = vsub.f32 %v181, 40.0
        %v694 = vsub.f32 %v182, 40.0
        %v695 = vsub.f32 %v183, 40.0
        %v696 = vsub.f32 %v184, 40.0
        %v697 = vsub.f32 %v185, 40.0
        %v698 = vsub.f32 %v186, 40.0
        %v699 = vsub.f32 %v187, 40.0
        %v700 = vsub.f32 %v188, 40.0
        %v701 = vsub.f32 %v189, 40.0
        %v702 = vsub.f32 %v190, 40.0
        %v703 = vsub.f32 %v191, 40.0
        %v704 = vsub.f32 %v192, 40.0
        %v705 = vsub.f32 %v193, 40.0
        %v706 = vsub.f32 %v194, 40.0
        %v707 = vsub.f32 %v195, 40.0
        %v708 = vsub.f32 %v196, 40.0
        %v709 = vsub.f32 %v197, 40.0
        %v710 = vsub.f32 %v198, 40.0
        %v711 = vsub.f32 %v199, 40.0
        %v712 = vsub.f32 %v200, 40.0
        %v713 = vsub.f32 %v201, 40.0
        %v714 = vsub.f32 %v202, 40.0
        %v715 = vsub.f32 %v203, 40.0
        %v716 = vsub.f32 %v204, 40.0
        %v717 = vsub.f32 %v205, 40.0
        %v718 = vsub.f32 %v206, 40.0
        %v719 = vsub.f32 %v207, 40.0
        %v720 = vsub.f32 %v208, 40.0
        %v721 = vsub.f32 %v209, 40.0
        %v722 = vsub.f32 %v210, 40.0
        %v723 = vsub.f32 %v211, 40.0
        %v724 = vsub.f32 %v212, 40.0
        %v725 = vsub.f32 %v213, 40.0
        %v726 = vsub.f32 %v214, 40.0
        %v727 = vsub.f32 %v215, 40.0
        %v728 = vsub.f32 %v216, 40.0
        %v729 = vsub.f32 %v217, 40.0
        %v730 = vsub.f32 %v218, 40.0
        %v731 = vsub.f32 %v219, 40.0
        %v732 = vsub.f32 %v220, 40.0
        %v733 = vsub.f32 %v221, 40.0
        %v734 = vsub.f32 %v222, 40.0
        %v735 = vsub.f32 %v223, 40.0
        %v736 = vsub.f32 %v224, 40.0
        %v737 = vsub.f32 %v225, 40.0
        %v738 = vsub.f32 %v226, 40.0
        %v739 = vsub.f32 %v227, 40.0
        %v740 = vsub.f32 %v228, 40.0
        %v741 = vsub.f32 %v229, 40.0
        %v742 = vsub.f32 %v230, 40.0
        %v743 = vsub.f32 %v231, 40.0
        %v744 = vsub.f32 %v232, 40.0
        %v745 = vsub.f32 %v233, 40.0
        %v746 = vsub.f32 %v234, 40.0
        %v747 = vsub.f32 %v235, 40.0
        %v748 = vsub.f32 %v236, 40.0
        %v749 = vsub.f32 %v237, 40.0
        %v750 = vsub.f32 %v238, 40.0
        %v751 = vsub.f32 %v239, 40.0
        %v752 = vsub.f32 %v240, 40.0
        %v753 = vsub.f32 %v241, 40.0
        %v754 = vsub.f32 %v242, 40.0
        %v755 = vsub.f32 %v243, 40.0
        %v756 = vsub.f32 %v244, 40.0
        %v757 = vsub.f32 %v245, 40.0
        %v758 = vsub.f32 %v246, 40.0
        %v759 = vsub.f32 %v247, 40.0
        %v760 = vsub.f32 %v248, 40.0
        %v761 = vsub.f32 %v249, 40.0
        %v762 = vsub.f32 %v250, 40.0
        %v763 = vsub.f32 %v251, 40.0
        %v764 = vsub.f32 %v252, 40.0
        %v765 = vsub.f32 %v253, 40.0
        %v766 = vsub.f32 %v254, 40.0
        %v767 = vsub.f32 %v255, 40.0
        %v768 = vsub.f32 %v256, 40.0
        %v769 = vsub.f32 %v257, 40.0
        %v770 = vsub.f32 %v258, 40.0
        %v771 = vsub.f32 %v259, 40.0
        %v772 = vsub.f32 %v260, 40.0
        %v773 = vsub.f32 %v261, 40.0
        %v774 = vsub.f32 %v262, 40.0
        %v775 = vsub.f32 %v263, 40.0
        %v776 = vsub.f32 %v264, 40.0
        %v777 = vsub.f32 %v265, 40.0
        %v778 = vsub.f32 %v266, 40.0
        %v779 = vsub.f32 %v267, 40.0
        %v780 = vsub.f32 %v268, 40.0
        %v781 = vsub.f32 %v269, 40.0
        %v782 = vsub.f32 %v270, 40.0
        %v783 = vsub.f32 %v271, 40.0
        %v784 = vsub.f32 %v272, 40.0
        %v785 = vsub.f32 %v273, 40.0
        %v786 = vsub.f32 %v274, 40.0
        %v787 = vsub.f32 %v275, 40.0
        %v788 = vsub.f32 %v276, 40.0
        %v789 = vsub.f32 %v277, 40.0
        %v790 = vsub.f32 %v278, 40.0
        %v791 = vsub.f32 %v279, 40.0
        %v792 = vsub.f32 %v280, 40.0
        %v793 = vsub.f32 %v281, 40.0
        %v794 = vsub.f32 %v282, 40.0
        %v795 = vsub.f32 %v283, 40.0
        %v796 = vsub.f32 %v284, 40.0
        %v797 = vsub.f32 %v285, 40.0
        %v798 = vsub.f32 %v286, 40.0
        %v799 = vsub.f32 %v287, 40.0
        %v800 = vsub.f32 %v288, 40.0
        %v801 = vsub.f32 %v289, 40.0
        %v802 = vsub.f32 %v290, 40.0
        %v803 = vsub.f32 %v291, 40.0
        %v804 = vsub.f32 %v292, 40.0
        %v805 = vsub.f32 %v293, 40.0
        %v806 = vsub.f32 %v294, 40.0
        %v807 = vsub.f32 %v295, 40.0
        %v808 = vsub.f32 %v296, 40.0
        %v809 = vsub.f32 %v297, 40.0
        %v810 = vsub.f32 %v298, 40.0
        %v811 = vsub.f32 %v299, 40.0
        %v812 = vsub.f32 %v300, 40.0
        %v813 = vsub.f32 %v301, 40.0
        %v814 = vsub.f32 %v302, 40.0
        %v815 = vsub.f32 %v303, 40.0
        %v816 = vsub.f32 %v304, 40.0
        %v817 = vsub.f32 %v305, 40.0
        %v818 = vsub.f32 %v306, 40.0
        %v819 = vsub.f32 %v307, 40.0
        %v820 = vsub.f32 %v308, 40.0
        %v821 = vsub.f32 %v309, 40.0
        %v822 = vsub.f32 %v310, 40.0
        %v823 = vsub.f32 %v311, 40.0
        %v824 = vsub.f32 %v312, 40.0
        %v825 = vsub.f32 %v313, 40.0
        %v826 = vsub.f32 %v314, 40.0
        %v827 = vsub.f32 %v315, 40.0
        %v828 = vsub.f32 %v316, 40.0
        %v829 = vsub.f32 %v317, 40.0
        %v830 = vsub.f32 %v318, 40.0
        %v831 = vsub.f32 %v319, 40.0
        %v832 = vsub.f32 %v320, 40.0
        %v833 = vsub.f32 %v321, 40.0
        %v834 = vsub.f32 %v322, 40.0
        %v835 = vsub.f32 %v323, 40.0
        %v836 = vsub.f32 %v324, 40.0
        %v837 = vsub.f32 %v325, 40.0
        %v838 = vsub.f32 %v326, 40.0
        %v839 = vsub.f32 %v327, 40.0
        %v840 = vsub.f32 %v328, 40.0
        %v841 = vsub.f32 %v329, 40.0
        %v842 = vsub.f32 %v330, 40.0
        %v843 = vsub.f32 %v331, 40.0
        %v844 = vsub.f32 %v332, 40.0
        %v845 = vsub.f32 %v333, 40.0
        %v846 = vsub.f32 %v334, 40.0
        %v847 = vsub.f32 %v335, 40.0
        %v848 = vsub.f32 %v336, 40.0
        %v849 = vsub.f32 %v337, 40.0
        %v850 = vsub.f32 %v338, 40.0
        %v851 = vsub.f32 %v339, 40.0
        %v852 = vsub.f32 %v340, 40.0
        %v853 = vsub.f32 %v341, 40.0
        %v854 = vsub.f32 %v342, 40.0
        %v855 = vsub.f32 %v343, 40.0
        %v856 = vsub.f32 %v344, 40.0
        %v857 = vsub.f32 %v345, 40.0
        %v858 = vsub.f32 %v346, 40.0
        %v859 = vsub.f32 %v347, 40.0
        %v860 = vsub.f32 %v348, 40.0
        %v861 = vsub.f32 %v349, 40.0
        %v862 = vsub.f32 %v350, 40.0
        %v863 = vsub.f32 %v351, 40.0
        %v864 = vsub.f32 %v352, 40.0
        %v865 = vsub.f32 %v353, 40.0
        %v866 = vsub.f32 %v354, 40.0
        %v867 = vsub.f32 %v355, 40.0
        %v868 = vsub.f32 %v356, 40.0
        %v869 = vsub.f32 %v357, 40.0
        %v870 = vsub.f32 %v358, 40.0
        %v871 = vsub.f32 %v359, 40.0
        %v872 = vsub.f32 %v360, 40.0
        %v873 = vsub.f32 %v361, 40.0
        %v874 = vsub.f32 %v362, 40.0
        %v875 = vsub.f32 %v363, 40.0
        %v876 = vsub.f32 %v364, 40.0
        %v877 = vsub.f32 %v365, 40.0
        %v878 = vsub.f32 %v366, 40.0
        %v879 = vsub.f32 %v367, 40.0
        %v880 = vsub.f32 %v368, 40.0
        %v881 = vsub.f32 %v369, 40.0
        %v882 = vsub.f32 %v370, 40.0
        %v883 = vsub.f32 %v371, 40.0
        %v884 = vsub.f32 %v372, 40.0
        %v885 = vsub.f32 %v373, 40.0
        %v886 = vsub.f32 %v374, 40.0
        %v887 = vsub.f32 %v375, 40.0
        %v888 = vsub.f32 %v376, 40.0
        %v889 = vsub.f32 %v377, 40.0
        %v890 = vsub.f32 %v378, 40.0
        %v891 = vsub.f32 %v379, 40.0
        %v892 = vsub.f32 %v380, 40.0
        %v893 = vsub.f32 %v381, 40.0
        %v894 = vsub.f32 %v382, 40.0
        %v895 = vsub.f32 %v383, 40.0
        %v896 = vsub.f32 %v384, 40.0
        %v897 = vsub.f32 %v385, 40.0
        %v898 = vsub.f32 %v386, 40.0
        %v899 = vsub.f32 %v387, 40.0
        %v900 = vsub.f32 %v388, 40.0
        %v901 = vsub.f32 %v389, 40.0
        %v902 = vsub.f32 %v390, 40.0
        %v903 = vsub.f32 %v391, 40.0
        %v904 = vsub.f32 %v392, 40.0
        %v905 = vsub.f32 %v393, 40.0
        %v906 = vsub.f32 %v394, 40.0
        %v907 = vsub.f32 %v395, 40.0
        %v908 = vsub.f32 %v396, 40.0
        %v909 = vsub.f32 %v397, 40.0
        %v910 = vsub.f32 %v398, 40.0
        %v911 = vsub.f32 %v399, 40.0
        %v912 = vsub.f32 %v400, 40.0
        %v913 = vsub.f32 %v401, 40.0
        %v914 = vsub.f32 %v402, 40.0
        %v915 = vsub.f32 %v403, 40.0
        %v916 = vsub.f32 %v404, 40.0
        %v917 = vsub.f32 %v405, 40.0
        %v918 = vsub.f32 %v406, 40.0
        %v919 = vsub.f32 %v407, 40.0
        %v920 = vsub.f32 %v408, 40.0
        %v921 = vsub.f32 %v409, 40.0
        %v922 = vsub.f32 %v410, 40.0
        %v923 = vsub.f32 %v411, 40.0
        %v924 = vsub.f32 %v412, 40.0
        %v925 = vsub.f32 %v413, 40.0
        %v926 = vsub.f32 %v414, 40.0
        %v927 = vsub.f32 %v415, 40.0
        %v928 = vsub.f32 %v416, 40.0
        %v929 = vsub.f32 %v417, 40.0
        %v930 = vsub.f32 %v418, 40.0
        %v931 = vsub.f32 %v419, 40.0
        %v932 = vsub.f32 %v420, 40.0
        %v933 = vsub.f32 %v421, 40.0
        %v934 = vsub.f32 %v422, 40.0
        %v935 = vsub.f32 %v423, 40.0
        %v936 = vsub.f32 %v424, 40.0
        %v937 = vsub.f32 %v425, 40.0
        %v938 = vsub.f32 %v426, 40.0
        %v939 = vsub.f32 %v427, 40.0
        %v940 = vsub.f32 %v428, 40.0
        %v941 = vsub.f32 %v429, 40.0
        %v942 = vsub.f32 %v430, 40.0
        %v943 = vsub.f32 %v431, 40.0
        %v944 = vsub.f32 %v432, 40.0
        %v945 = vsub.f32 %v433, 40.0
        %v946 = vsub.f32 %v434, 40.0
        %v947 = vsub.f32 %v435, 40.0
        %v948 = vsub.f32 %v436, 40.0
        %v949 = vsub.f32 %v437, 40.0
        %v950 = vsub.f32 %v438, 40.0
        %v951 = vsub.f32 %v439, 40.0
        %v952 = vsub.f32 %v440, 40.0
        %v953 = vsub.f32 %v441, 40.0
        %v954 = vsub.f32 %v442, 40.0
        %v955 = vsub.f32 %v443, 40.0
        %v956 = vsub.f32 %v444, 40.0
        %v957 = vsub.f32 %v445, 40.0
        %v958 = vsub.f32 %v446, 40.0
        %v959 = vsub.f32 %v447, 40.0
        %v960 = vsub.f32 %v448, 40.0
        %v961 = vsub.f32 %v449, 40.0
        %v962 = vsub.f32 %v450, 40.0
        %v963 = vsub.f32 %v451, 40.0
        %v964 = vsub.f32 %v452, 40.0
        %v965 = vsub.f32 %v453, 40.0
        %v966 = vsub.f32 %v454, 40.0
        %v967 = vsub.f32 %v455, 40.0
        %v968 = vsub.f32 %v456, 40.0
        %v969 = vsub.f32 %v457, 40.0
        %v970 = vsub.f32 %v458, 40.0
        %v971 = vsub.f32 %v459, 40.0
        %v972 = vsub.f32 %v460, 40.0
        %v973 = vsub.f32 %v461, 40.0
        %v974 = vsub.f32 %v462, 40.0
        %v975 = vsub.f32 %v463, 40.0
        %v976 = vsub.f32 %v464, 40.0
        %v977 = vsub.f32 %v465, 40.0
        %v978 = vsub.f32 %v466, 40.0
        %v979 = vsub.f32 %v467, 40.0
        %v980 = vsub.f32 %v468, 40.0
        %v981 = vsub.f32 %v469, 40.0
        %v982 = vsub.f32 %v470, 40.0
        %v983 = vsub.f32 %v471, 40.0
        %v984 = vsub.f32 %v472, 40.0
        %v985 = vsub.f32 %v473, 40.0
        %v986 = vsub.f32 %v474, 40.0
        %v987 = vsub.f32 %v475, 40.0
        %v988 = vsub.f32 %v476, 40.0
        %v989 = vsub.f32 %v477, 40.0
        %v990 = vsub.f32 %v478, 40.0
        %v991 = vsub.f32 %v479, 40.0
        %v992 = vsub.f32 %v480, 40.0
        %v993 = vsub.f32 %v481, 40.0
        %v994 = vsub.f32 %v482, 40.0
        %v995 = vsub.f32 %v483, 40.0
        %v996 = vsub.f32 %v484, 40.0
        %v997 = vsub.f32 %v485, 40.0
        %v998 = vsub.f32 %v486, 40.0
        %v999 = vsub.f32 %v487, 40.0
        %v1000 = vsub.f32 %v488, 40.0
        %v1001 = vsub.f32 %v489, 40.0
        %v1002 = vsub.f32 %v490, 40.0
        %v1003 = vsub.f32 %v491, 40.0
        %v1004 = vsub.f32 %v492, 40.0
        %v1005 = vsub.f32 %v493, 40.0
        %v1006 = vsub.f32 %v494, 40.0
        %v1007 = vsub.f32 %v495, 40.0
        %v1008 = vsub.f32 %v496, 40.0
        %v1009 = vsub.f32 %v497, 40.0
        %v1010 = vsub.f32 %v498, 40.0
        %v1011 = vsub.f32 %v499, 40.0
        %v1012 = vsub.f32 %v500, 40.0
        %v1013 = vsub.f32 %v501, 40.0
        %v1014 = vsub.f32 %v502, 40.0
        %v1015 = vsub.f32 %v503, 40.0
        %v1016 = vsub.f32 %v504, 40.0
        %v1017 = vsub.f32 %v505, 40.0
        %v1018 = vsub.f32 %v506, 40.0
        %v1019 = vsub.f32 %v507, 40.0
        %v1020 = vsub.f32 %v508, 40.0
        %v1021 = vsub.f32 %v509, 40.0
        %v1022 = vsub.f32 %v510, 40.0
        %v1023 = vsub.f32 %v511, 40.0
        %v1024 = vsub.f32 %v512, 40.0
        %v1025 = vsub.f32 %v513, 40.0
        %v1026 = vsub.f32 %v514, 40.0
        %v1027 = vsub.f32 %v515, 40.0
        %v1028 = vsub.f32 %v516, 40.0
        %v1029 = vsub.f32 %v517, 40.0
        %v1030 = vsub.f32 %v518, 40.0
        %v1031 = vsub.f32 %v519, 40.0
        %v1032 = vsub.f32 %v520, 40.0
        %v1033 = vsub.f32 %v521, 40.0
        %v1034 = vsub.f32 %v522, 40.0
        %v1035 = vsub.f32 %v523, 40.0
        %v1036 = vsub.f32 %v524, 40.0
        %v1037 = vsub.f32 %v525, 40.0
        %v1038 = vsub.f32 %v526, 40.0
        %v1039 = vsub.f32 %v527, 40.0
        %v1040 = vsub.f32 %v528, 40.0
        %v1041 = vsub.f32 %v529, 40.0
        %v1042 = vsub.f32 %v530, 40.0
        %v1043 = vsub.f32 %v531, 40.0
        %v1044 = vsub.f32 %v532, 40.0
        %v1045 = vsub.f32 %v533, 40.0
        %v1046 = vsub.f32 %v534, 40.0
        %v1047 = vsub.f32 %v535, 40.0
        %v1048 = vsub.f32 %v536, 40.0
        %v1049 = vsub.f32 %v537, 40.0
        %v1050 = vsub.f32 %v538, 40.0
        %v1051 = vsub.f32 %v539, 40.0
        %v1052 = vsub.f32 %v540, 40.0
        %v1053 = vsub.f32 %v541, 40.0
        %v1054 = vsub.f32 %v542, 40.0
        %v1055 = vsub.f32 %v543, 40.0
        %v1056 = vsub.f32 %v544, 40.0
        %v1057 = vsub.f32 %v545, 40.0
        %v1058 = vsub.f32 %v546, 40.0
        %v1059 = vsub.f32 %v547, 40.0
        %v1060 = vsub.f32 %v548, 40.0
        %v1061 = vsub.f32 %v549, 40.0
        %v1062 = vsub.f32 %v550, 40.0
        %v1063 = vsub.f32 %v551, 40.0
        %v1064 = vsub.f32 %v552, 40.0
        %v1065 = vsub.f32 %v553, 40.0
        %v1066 = vsub.f32 %v554, 40.0
        %v1067 = vsub.f32 %v555, 40.0
        %v1068 = vsub.f32 %v556, 40.0
        %v1069 = vsub.f32 %v557, 40.0
        %v1070 = vsub.f32 %v558, 40.0
        %v1071 = vsub.f32 %v559, 40.0
        %v1072 = vsub.f32 %v560, 40.0
        %v1073 = vsub.f32 %v561, 40.0
        %v1074 = vsub.f32 %v562, 40.0
        %v1075 = vsub.f32 %v563, 40.0
        %v1076 = vsub.f32 %v564, 40.0
        %v1077 = vsub.f32 %v565, 40.0
        %v1078 = vsub.f32 %v566, 40.0
        %v1079 = vsub.f32 %v567, 40.0
        %v1080 = vsub.f32 %v568, 40.0
        %v1081 = vsub.f32 %v569, 40.0
        %v1082 = vsub.f32 %v570, 40.0
        %v1083 = vsub.f32 %v571, 40.0
        %v1084 = vsub.f32 %v572, 40.0
        %v1085 = vsub.f32 %v573, 40.0
        %v1086 = vsub.f32 %v574, 40.0
        %v1087 = vsub.f32 %v575, 40.0
        %v1088 = vsub.f32 %v576, 40.0
        %v1089 = vsub.f32 %v577, 40.0
        %v1090 = vsub.f32 %v578, 40.0
        %v1091 = vsub.f32 %v579, 40.0
        %v1092 = vsub.f32 %v580, 40.0
        %v1093 = vsub.f32 %v581, 40.0
        %v1094 = vsub.f32 %v582, 40.0
        %v1095 = vsub.f32 %v583, 40.0
        %v1096 = vsub.f32 %v584, 40.0
        %v1097 = vsub.f32 %v585, 40.0
        %v1098 = vsub.f32 %v586, 40.0
        %v1099 = vsub.f32 %v587, 40.0
        %v1100 = vsub.f32 %v588, 40.0
        %v1101 = vsub.f32 %v589, 40.0
        %v1102 = vsub.f32 %v590, 40.0
        %v1103 = vsub.f32 %v591, 40.0
        %v1104 = vsub.f32 %v592, 40.0
        %v1105 = vsub.f32 %v593, 40.0
        %v1106 = vsub.f32 %v594, 40.0
        %v1107 = vsub.f32 %v595, 40.0
        %v1108 = vsub.f32 %v596, 40.0
        %v1109 = vsub.f32 %v597, 40.0
        %v1110 = vsub.f32 %v598, 40.0
        %v1111 = vsub.f32 %v599, 40.0
        %v1112 = vsub.f32 %v600, 40.0
        %v1113 = vsub.f32 %v601, 40.0
        %v1114 = vsub.f32 %v602, 40.0
        %v1115 = vsub.f32 %v603, 40.0
        %v1116 = vsub.f32 %v604, 40.0
        %v1117 = vsub.f32 %v605, 40.0
        %v1118 = vsub.f32 %v606, 40.0
        %v1119 = vsub.f32 %v607, 40.0
        %v1120 = vsub.f32 %v608, 40.0
        %v1121 = vsub.f32 %v609, 40.0
        %v1122 = vsub.f32 %v610, 40.0
        %v1123 = vsub.f32 %v611, 40.0
        %v1124 = vsub.f32 %v612, 40.0
        %v1125 = vsub.f32 %v613, 40.0
        %v1126 = vsub.f32 %v614, 40.0
        %v1127 = vsub.f32 %v615, 40.0
        %v1128 = vsub.f32 %v616, 40.0
        %v1129 = vsub.f32 %v617, 40.0
        %v1130 = vsub.f32 %v618, 40.0
        %v1131 = vsub.f32 %v619, 40.0
        %v1132 = vsub.f32 %v620, 40.0
        %v1133 = vsub.f32 %v621, 40.0
        %v1134 = vsub.f32 %v622, 40.0
        %v1135 = vsub.f32 %v623, 40.0
        %v1136 = vsub.f32 %v624, 40.0
        %v1137 = vsub.f32 %v625, 40.0
        %v1138 = vsub.f32 %v626, 40.0
        %v1139 = vsub.f32 %v627, 40.0
        %v1140 = vsub.f32 %v628, 40.0
        %v1141 = vsub.f32 %v629, 40.0
        %v1142 = vsub.f32 %v630, 40.0
        %v1143 = vsub.f32 %v631, 40.0
        %v1144 = vsub.f32 %v632, 40.0
        %v1145 = vsub.f32 %v633, 40.0
        %v1146 = vsub.f32 %v634, 40.0
        %v1147 = vsub.f32 %v635, 40.0
        %v1148 = vsub.f32 %v636, 40.0
        %v1149 = vsub.f32 %v637, 40.0
        %v1150 = vsub.f32 %v638, 40.0
        %v1151 = vsub.f32 %v639, 40.0
        %v1152 = vsub.f32 %v640, 40.0
        %v1153 = vsub.f32 %v641, 40.0
        %v1154 = vsub.f32 %v642, 40.0
        %v1155 = vsub.f32 %v643, 40.0
        %v1156 = vsub.f32 %v644, 40.0
        %v1157 = vsub.f32 %v645, 40.0
        %v1158 = vsub.f32 %v646, 40.0
        %v1159 = vsub.f32 %v647, 40.0
        %v1160 = vsub.f32 %v648, 40.0
        %v1161 = vsub.f32 %v649, 40.0
        %v1162 = vrcp.pop 80.0
        %v1163 = vmul.f32 %v650, %v1162
        %v1164 = vmul.f32 %v651, %v1162
        %v1165 = vmul.f32 %v652, %v1162
        %v1166 = vmul.f32 %v653, %v1162
        %v1167 = vmul.f32 %v654, %v1162
        %v1168 = vmul.f32 %v655, %v1162
        %v1169 = vmul.f32 %v656, %v1162
        %v1170 = vmul.f32 %v657, %v1162
        %v1171 = vmul.f32 %v658, %v1162
        %v1172 = vmul.f32 %v659, %v1162
        %v1173 = vmul.f32 %v660, %v1162
        %v1174 = vmul.f32 %v661, %v1162
        %v1175 = vmul.f32 %v662, %v1162
        %v1176 = vmul.f32 %v663, %v1162
        %v1177 = vmul.f32 %v664, %v1162
        %v1178 = vmul.f32 %v665, %v1162
        %v1179 = vmul.f32 %v666, %v1162
        %v1180 = vmul.f32 %v667, %v1162
        %v1181 = vmul.f32 %v668, %v1162
        %v1182 = vmul.f32 %v669, %v1162
        %v1183 = vmul.f32 %v670, %v1162
        %v1184 = vmul.f32 %v671, %v1162
        %v1185 = vmul.f32 %v672, %v1162
        %v1186 = vmul.f32 %v673, %v1162
        %v1187 = vmul.f32 %v674, %v1162
        %v1188 = vmul.f32 %v675, %v1162
        %v1189 = vmul.f32 %v676, %v1162
        %v1190 = vmul.f32 %v677, %v1162
        %v1191 = vmul.f32 %v678, %v1162
        %v1192 = vmul.f32 %v679, %v1162
        %v1193 = vmul.f32 %v680, %v1162
        %v1194 = vmul.f32 %v681, %v1162
        %v1195 = vmul.f32 %v682, %v1162
        %v1196 = vmul.f32 %v683, %v1162
        %v1197 = vmul.f32 %v684, %v1162
        %v1198 = vmul.f32 %v685, %v1162
        %v1199 = vmul.f32 %v686, %v1162
        %v1200 = vmul.f32 %v687, %v1162
        %v1201 = vmul.f32 %v688, %v1162
        %v1202 = vmul.f32 %v689, %v1162
        %v1203 = vmul.f32 %v690, %v1162
        %v1204 = vmul.f32 %v691, %v1162
        %v1205 = vmul.f32 %v692, %v1162
        %v1206 = vmul.f32 %v693, %v1162
        %v1207 = vmul.f32 %v694, %v1162
        %v1208 = vmul.f32 %v695, %v1162
        %v1209 = vmul.f32 %v696, %v1162
        %v1210 = vmul.f32 %v697, %v1162
        %v1211 = vmul.f32 %v698, %v1162
        %v1212 = vmul.f32 %v699, %v1162
        %v1213 = vmul.f32 %v700, %v1162
        %v1214 = vmul.f32 %v701, %v1162
        %v1215 = vmul.f32 %v702, %v1162
        %v1216 = vmul.f32 %v703, %v1162
        %v1217 = vmul.f32 %v704, %v1162
        %v1218 = vmul.f32 %v705, %v1162
        %v1219 = vmul.f32 %v706, %v1162
        %v1220 = vmul.f32 %v707, %v1162
        %v1221 = vmul.f32 %v708, %v1162
        %v1222 = vmul.f32 %v709, %v1162
        %v1223 = vmul.f32 %v710, %v1162
        %v1224 = vmul.f32 %v711, %v1162
        %v1225 = vmul.f32 %v712, %v1162
        %v1226 = vmul.f32 %v713, %v1162
        %v1227 = vmul.f32 %v714, %v1162
        %v1228 = vmul.f32 %v715, %v1162
        %v1229 = vmul.f32 %v716, %v1162
        %v1230 = vmul.f32 %v717, %v1162
        %v1231 = vmul.f32 %v718, %v1162
        %v1232 = vmul.f32 %v719, %v1162
        %v1233 = vmul.f32 %v720, %v1162
        %v1234 = vmul.f32 %v721, %v1162
        %v1235 = vmul.f32 %v722, %v1162
        %v1236 = vmul.f32 %v723, %v1162
        %v1237 = vmul.f32 %v724, %v1162
        %v1238 = vmul.f32 %v725, %v1162
        %v1239 = vmul.f32 %v726, %v1162
        %v1240 = vmul.f32 %v727, %v1162
        %v1241 = vmul.f32 %v728, %v1162
        %v1242 = vmul.f32 %v729, %v1162
        %v1243 = vmul.f32 %v730, %v1162
        %v1244 = vmul.f32 %v731, %v1162
        %v1245 = vmul.f32 %v732, %v1162
        %v1246 = vmul.f32 %v733, %v1162
        %v1247 = vmul.f32 %v734, %v1162
        %v1248 = vmul.f32 %v735, %v1162
        %v1249 = vmul.f32 %v736, %v1162
        %v1250 = vmul.f32 %v737, %v1162
        %v1251 = vmul.f32 %v738, %v1162
        %v1252 = vmul.f32 %v739, %v1162
        %v1253 = vmul.f32 %v740, %v1162
        %v1254 = vmul.f32 %v741, %v1162
        %v1255 = vmul.f32 %v742, %v1162
        %v1256 = vmul.f32 %v743, %v1162
        %v1257 = vmul.f32 %v744, %v1162
        %v1258 = vmul.f32 %v745, %v1162
        %v1259 = vmul.f32 %v746, %v1162
        %v1260 = vmul.f32 %v747, %v1162
        %v1261 = vmul.f32 %v748, %v1162
        %v1262 = vmul.f32 %v749, %v1162
        %v1263 = vmul.f32 %v750, %v1162
        %v1264 = vmul.f32 %v751, %v1162
        %v1265 = vmul.f32 %v752, %v1162
        %v1266 = vmul.f32 %v753, %v1162
        %v1267 = vmul.f32 %v754, %v1162
        %v1268 = vmul.f32 %v755, %v1162
        %v1269 = vmul.f32 %v756, %v1162
        %v1270 = vmul.f32 %v757, %v1162
        %v1271 = vmul.f32 %v758, %v1162
        %v1272 = vmul.f32 %v759, %v1162
        %v1273 = vmul.f32 %v760, %v1162
        %v1274 = vmul.f32 %v761, %v1162
        %v1275 = vmul.f32 %v762, %v1162
        %v1276 = vmul.f32 %v763, %v1162
        %v1277 = vmul.f32 %v764, %v1162
        %v1278 = vmul.f32 %v765, %v1162
        %v1279 = vmul.f32 %v766, %v1162
        %v1280 = vmul.f32 %v767, %v1162
        %v1281 = vmul.f32 %v768, %v1162
        %v1282 = vmul.f32 %v769, %v1162
        %v1283 = vmul.f32 %v770, %v1162
        %v1284 = vmul.f32 %v771, %v1162
        %v1285 = vmul.f32 %v772, %v1162
        %v1286 = vmul.f32 %v773, %v1162
        %v1287 = vmul.f32 %v774, %v1162
        %v1288 = vmul.f32 %v775, %v1162
        %v1289 = vmul.f32 %v776, %v1162
        %v1290 = vmul.f32 %v777, %v1162
        %v1291 = vmul.f32 %v778, %v1162
        %v1292 = vmul.f32 %v779, %v1162
        %v1293 = vmul.f32 %v780, %v1162
        %v1294 = vmul.f32 %v781, %v1162
        %v1295 = vmul.f32 %v782, %v1162
        %v1296 = vmul.f32 %v783, %v1162
        %v1297 = vmul.f32 %v784, %v1162
        %v1298 = vmul.f32 %v785, %v1162
        %v1299 = vmul.f32 %v786, %v1162
        %v1300 = vmul.f32 %v787, %v1162
        %v1301 = vmul.f32 %v788, %v1162
        %v1302 = vmul.f32 %v789, %v1162
        %v1303 = vmul.f32 %v790, %v1162
        %v1304 = vmul.f32 %v791, %v1162
        %v1305 = vmul.f32 %v792, %v1162
        %v1306 = vmul.f32 %v793, %v1162
        %v1307 = vmul.f32 %v794, %v1162
        %v1308 = vmul.f32 %v795, %v1162
        %v1309 = vmul.f32 %v796, %v1162
        %v1310 = vmul.f32 %v797, %v1162
        %v1311 = vmul.f32 %v798, %v1162
        %v1312 = vmul.f32 %v799, %v1162
        %v1313 = vmul.f32 %v800, %v1162
        %v1314 = vmul.f32 %v801, %v1162
        %v1315 = vmul.f32 %v802, %v1162
        %v1316 = vmul.f32 %v803, %v1162
        %v1317 = vmul.f32 %v804, %v1162
        %v1318 = vmul.f32 %v805, %v1162
        %v1319 = vmul.f32 %v806, %v1162
        %v1320 = vmul.f32 %v807, %v1162
        %v1321 = vmul.f32 %v808, %v1162
        %v1322 = vmul.f32 %v809, %v1162
        %v1323 = vmul.f32 %v810, %v1162
        %v1324 = vmul.f32 %v811, %v1162
        %v1325 = vmul.f32 %v812, %v1162
        %v1326 = vmul.f32 %v813, %v1162
        %v1327 = vmul.f32 %v814, %v1162
        %v1328 = vmul.f32 %v815, %v1162
        %v1329 = vmul.f32 %v816, %v1162
        %v1330 = vmul.f32 %v817, %v1162
        %v1331 = vmul.f32 %v818, %v1162
        %v1332 = vmul.f32 %v819, %v1162
        %v1333 = vmul.f32 %v820, %v1162
        %v1334 = vmul.f32 %v821, %v1162
        %v1335 = vmul.f32 %v822, %v1162
        %v1336 = vmul.f32 %v823, %v1162
        %v1337 = vmul.f32 %v824, %v1162
        %v1338 = vmul.f32 %v825, %v1162
        %v1339 = vmul.f32 %v826, %v1162
        %v1340 = vmul.f32 %v827, %v1162
        %v1341 = vmul.f32 %v828, %v1162
        %v1342 = vmul.f32 %v829, %v1162
        %v1343 = vmul.f32 %v830, %v1162
        %v1344 = vmul.f32 %v831, %v1162
        %v1345 = vmul.f32 %v832, %v1162
        %v1346 = vmul.f32 %v833, %v1162
        %v1347 = vmul.f32 %v834, %v1162
        %v1348 = vmul.f32 %v835, %v1162
        %v1349 = vmul.f32 %v836, %v1162
        %v1350 = vmul.f32 %v837, %v1162
        %v1351 = vmul.f32 %v838, %v1162
        %v1352 = vmul.f32 %v839, %v1162
        %v1353 = vmul.f32 %v840, %v1162
        %v1354 = vmul.f32 %v841, %v1162
        %v1355 = vmul.f32 %v842, %v1162
        %v1356 = vmul.f32 %v843, %v1162
        %v1357 = vmul.f32 %v844, %v1162
        %v1358 = vmul.f32 %v845, %v1162
        %v1359 = vmul.f32 %v846, %v1162
        %v1360 = vmul.f32 %v847, %v1162
        %v1361 = vmul.f32 %v848, %v1162
        %v1362 = vmul.f32 %v849, %v1162
        %v1363 = vmul.f32 %v850, %v1162
        %v1364 = vmul.f32 %v851, %v1162
        %v1365 = vmul.f32 %v852, %v1162
        %v1366 = vmul.f32 %v853, %v1162
        %v1367 = vmul.f32 %v854, %v1162
        %v1368 = vmul.f32 %v855, %v1162
        %v1369 = vmul.f32 %v856, %v1162
        %v1370 = vmul.f32 %v857, %v1162
        %v1371 = vmul.f32 %v858, %v1162
        %v1372 = vmul.f32 %v859, %v1162
        %v1373 = vmul.f32 %v860, %v1162
        %v1374 = vmul.f32 %v861, %v1162
        %v1375 = vmul.f32 %v862, %v1162
        %v1376 = vmul.f32 %v863, %v1162
        %v1377 = vmul.f32 %v864, %v1162
        %v1378 = vmul.f32 %v865, %v1162
        %v1379 = vmul.f32 %v866, %v1162
        %v1380 = vmul.f32 %v867, %v1162
        %v1381 = vmul.f32 %v868, %v1162
        %v1382 = vmul.f32 %v869, %v1162
        %v1383 = vmul.f32 %v870, %v1162
        %v1384 = vmul.f32 %v871, %v1162
        %v1385 = vmul.f32 %v872, %v1162
        %v1386 = vmul.f32 %v873, %v1162
        %v1387 = vmul.f32 %v874, %v1162
        %v1388 = vmul.f32 %v875, %v1162
        %v1389 = vmul.f32 %v876, %v1162
        %v1390 = vmul.f32 %v877, %v1162
        %v1391 = vmul.f32 %v878, %v1162
        %v1392 = vmul.f32 %v879, %v1162
        %v1393 = vmul.f32 %v880, %v1162
        %v1394 = vmul.f32 %v881, %v1162
        %v1395 = vmul.f32 %v882, %v1162
        %v1396 = vmul.f32 %v883, %v1162
        %v1397 = vmul.f32 %v884, %v1162
        %v1398 = vmul.f32 %v885, %v1162
        %v1399 = vmul.f32 %v886, %v1162
        %v1400 = vmul.f32 %v887, %v1162
        %v1401 = vmul.f32 %v888, %v1162
        %v1402 = vmul.f32 %v889, %v1162
        %v1403 = vmul.f32 %v890, %v1162
        %v1404 = vmul.f32 %v891, %v1162
        %v1405 = vmul.f32 %v892, %v1162
        %v1406 = vmul.f32 %v893, %v1162
        %v1407 = vmul.f32 %v894, %v1162
        %v1408 = vmul.f32 %v895, %v1162
        %v1409 = vmul.f32 %v896, %v1162
        %v1410 = vmul.f32 %v897, %v1162
        %v1411 = vmul.f32 %v898, %v1162
        %v1412 = vmul.f32 %v899, %v1162
        %v1413 = vmul.f32 %v900, %v1162
        %v1414 = vmul.f32 %v901, %v1162
        %v1415 = vmul.f32 %v902, %v1162
        %v1416 = vmul.f32 %v903, %v1162
        %v1417 = vmul.f32 %v904, %v1162
        %v1418 = vmul.f32 %v905, %v1162
        %v1419 = vmul.f32 %v906, %v1162
        %v1420 = vmul.f32 %v907, %v1162
        %v1421 = vmul.f32 %v908, %v1162
        %v1422 = vmul.f32 %v909, %v1162
        %v1423 = vmul.f32 %v910, %v1162
        %v1424 = vmul.f32 %v911, %v1162
        %v1425 = vmul.f32 %v912, %v1162
        %v1426 = vmul.f32 %v913, %v1162
        %v1427 = vmul.f32 %v914, %v1162
        %v1428 = vmul.f32 %v915, %v1162
        %v1429 = vmul.f32 %v916, %v1162
        %v1430 = vmul.f32 %v917, %v1162
        %v1431 = vmul.f32 %v918, %v1162
        %v1432 = vmul.f32 %v919, %v1162
        %v1433 = vmul.f32 %v920, %v1162
        %v1434 = vmul.f32 %v921, %v1162
        %v1435 = vmul.f32 %v922, %v1162
        %v1436 = vmul.f32 %v923, %v1162
        %v1437 = vmul.f32 %v924, %v1162
        %v1438 = vmul.f32 %v925, %v1162
        %v1439 = vmul.f32 %v926, %v1162
        %v1440 = vmul.f32 %v927, %v1162
        %v1441 = vmul.f32 %v928, %v1162
        %v1442 = vmul.f32 %v929, %v1162
        %v1443 = vmul.f32 %v930, %v1162
        %v1444 = vmul.f32 %v931, %v1162
        %v1445 = vmul.f32 %v932, %v1162
        %v1446 = vmul.f32 %v933, %v1162
        %v1447 = vmul.f32 %v934, %v1162
        %v1448 = vmul.f32 %v935, %v1162
        %v1449 = vmul.f32 %v936, %v1162
        %v1450 = vmul.f32 %v937, %v1162
        %v1451 = vmul.f32 %v938, %v1162
        %v1452 = vmul.f32 %v939, %v1162
        %v1453 = vmul.f32 %v940, %v1162
        %v1454 = vmul.f32 %v941, %v1162
        %v1455 = vmul.f32 %v942, %v1162
        %v1456 = vmul.f32 %v943, %v1162
        %v1457 = vmul.f32 %v944, %v1162
        %v1458 = vmul.f32 %v945, %v1162
        %v1459 = vmul.f32 %v946, %v1162
        %v1460 = vmul.f32 %v947, %v1162
        %v1461 = vmul.f32 %v948, %v1162
        %v1462 = vmul.f32 %v949, %v1162
        %v1463 = vmul.f32 %v950, %v1162
        %v1464 = vmul.f32 %v951, %v1162
        %v1465 = vmul.f32 %v952, %v1162
        %v1466 = vmul.f32 %v953, %v1162
        %v1467 = vmul.f32 %v954, %v1162
        %v1468 = vmul.f32 %v955, %v1162
        %v1469 = vmul.f32 %v956, %v1162
        %v1470 = vmul.f32 %v957, %v1162
        %v1471 = vmul.f32 %v958, %v1162
        %v1472 = vmul.f32 %v959, %v1162
        %v1473 = vmul.f32 %v960, %v1162
        %v1474 = vmul.f32 %v961, %v1162
        %v1475 = vmul.f32 %v962, %v1162
        %v1476 = vmul.f32 %v963, %v1162
        %v1477 = vmul.f32 %v964, %v1162
        %v1478 = vmul.f32 %v965, %v1162
        %v1479 = vmul.f32 %v966, %v1162
        %v1480 = vmul.f32 %v967, %v1162
        %v1481 = vmul.f32 %v968, %v1162
        %v1482 = vmul.f32 %v969, %v1162
        %v1483 = vmul.f32 %v970, %v1162
        %v1484 = vmul.f32 %v971, %v1162
        %v1485 = vmul.f32 %v972, %v1162
        %v1486 = vmul.f32 %v973, %v1162
        %v1487 = vmul.f32 %v974, %v1162
        %v1488 = vmul.f32 %v975, %v1162
        %v1489 = vmul.f32 %v976, %v1162
        %v1490 = vmul.f32 %v977, %v1162
        %v1491 = vmul.f32 %v978, %v1162
        %v1492 = vmul.f32 %v979, %v1162
        %v1493 = vmul.f32 %v980, %v1162
        %v1494 = vmul.f32 %v981, %v1162
        %v1495 = vmul.f32 %v982, %v1162
        %v1496 = vmul.f32 %v983, %v1162
        %v1497 = vmul.f32 %v984, %v1162
        %v1498 = vmul.f32 %v985, %v1162
        %v1499 = vmul.f32 %v986, %v1162
        %v1500 = vmul.f32 %v987, %v1162
        %v1501 = vmul.f32 %v988, %v1162
        %v1502 = vmul.f32 %v989, %v1162
        %v1503 = vmul.f32 %v990, %v1162
        %v1504 = vmul.f32 %v991, %v1162
        %v1505 = vmul.f32 %v992, %v1162
        %v1506 = vmul.f32 %v993, %v1162
        %v1507 = vmul.f32 %v994, %v1162
        %v1508 = vmul.f32 %v995, %v1162
        %v1509 = vmul.f32 %v996, %v1162
        %v1510 = vmul.f32 %v997, %v1162
        %v1511 = vmul.f32 %v998, %v1162
        %v1512 = vmul.f32 %v999, %v1162
        %v1513 = vmul.f32 %v1000, %v1162
        %v1514 = vmul.f32 %v1001, %v1162
        %v1515 = vmul.f32 %v1002, %v1162
        %v1516 = vmul.f32 %v1003, %v1162
        %v1517 = vmul.f32 %v1004, %v1162
        %v1518 = vmul.f32 %v1005, %v1162
        %v1519 = vmul.f32 %v1006, %v1162
        %v1520 = vmul.f32 %v1007, %v1162
        %v1521 = vmul.f32 %v1008, %v1162
        %v1522 = vmul.f32 %v1009, %v1162
        %v1523 = vmul.f32 %v1010, %v1162
        %v1524 = vmul.f32 %v1011, %v1162
        %v1525 = vmul.f32 %v1012, %v1162
        %v1526 = vmul.f32 %v1013, %v1162
        %v1527 = vmul.f32 %v1014, %v1162
        %v1528 = vmul.f32 %v1015, %v1162
        %v1529 = vmul.f32 %v1016, %v1162
        %v1530 = vmul.f32 %v1017, %v1162
        %v1531 = vmul.f32 %v1018, %v1162
        %v1532 = vmul.f32 %v1019, %v1162
        %v1533 = vmul.f32 %v1020, %v1162
        %v1534 = vmul.f32 %v1021, %v1162
        %v1535 = vmul.f32 %v1022, %v1162
        %v1536 = vmul.f32 %v1023, %v1162
        %v1537 = vmul.f32 %v1024, %v1162
        %v1538 = vmul.f32 %v1025, %v1162
        %v1539 = vmul.f32 %v1026, %v1162
        %v1540 = vmul.f32 %v1027, %v1162
        %v1541 = vmul.f32 %v1028, %v1162
        %v1542 = vmul.f32 %v1029, %v1162
        %v1543 = vmul.f32 %v1030, %v1162
        %v1544 = vmul.f32 %v1031, %v1162
        %v1545 = vmul.f32 %v1032, %v1162
        %v1546 = vmul.f32 %v1033, %v1162
        %v1547 = vmul.f32 %v1034, %v1162
        %v1548 = vmul.f32 %v1035, %v1162
        %v1549 = vmul.f32 %v1036, %v1162
        %v1550 = vmul.f32 %v1037, %v1162
        %v1551 = vmul.f32 %v1038, %v1162
        %v1552 = vmul.f32 %v1039, %v1162
        %v1553 = vmul.f32 %v1040, %v1162
        %v1554 = vmul.f32 %v1041, %v1162
        %v1555 = vmul.f32 %v1042, %v1162
        %v1556 = vmul.f32 %v1043, %v1162
        %v1557 = vmul.f32 %v1044, %v1162
        %v1558 = vmul.f32 %v1045, %v1162
        %v1559 = vmul.f32 %v1046, %v1162
        %v1560 = vmul.f32 %v1047, %v1162
        %v1561 = vmul.f32 %v1048, %v1162
        %v1562 = vmul.f32 %v1049, %v1162
        %v1563 = vmul.f32 %v1050, %v1162
        %v1564 = vmul.f32 %v1051, %v1162
        %v1565 = vmul.f32 %v1052, %v1162
        %v1566 = vmul.f32 %v1053, %v1162
        %v1567 = vmul.f32 %v1054, %v1162
        %v1568 = vmul.f32 %v1055, %v1162
        %v1569 = vmul.f32 %v1056, %v1162
        %v1570 = vmul.f32 %v1057, %v1162
        %v1571 = vmul.f32 %v1058, %v1162
        %v1572 = vmul.f32 %v1059, %v1162
        %v1573 = vmul.f32 %v1060, %v1162
        %v1574 = vmul.f32 %v1061, %v1162
        %v1575 = vmul.f32 %v1062, %v1162
        %v1576 = vmul.f32 %v1063, %v1162
        %v1577 = vmul.f32 %v1064, %v1162
        %v1578 = vmul.f32 %v1065, %v1162
        %v1579 = vmul.f32 %v1066, %v1162
        %v1580 = vmul.f32 %v1067, %v1162
        %v1581 = vmul.f32 %v1068, %v1162
        %v1582 = vmul.f32 %v1069, %v1162
        %v1583 = vmul.f32 %v1070, %v1162
        %v1584 = vmul.f32 %v1071, %v1162
        %v1585 = vmul.f32 %v1072, %v1162
        %v1586 = vmul.f32 %v1073, %v1162
        %v1587 = vmul.f32 %v1074, %v1162
        %v1588 = vmul.f32 %v1075, %v1162
        %v1589 = vmul.f32 %v1076, %v1162
        %v1590 = vmul.f32 %v1077, %v1162
        %v1591 = vmul.f32 %v1078, %v1162
        %v1592 = vmul.f32 %v1079, %v1162
        %v1593 = vmul.f32 %v1080, %v1162
        %v1594 = vmul.f32 %v1081, %v1162
        %v1595 = vmul.f32 %v1082, %v1162
        %v1596 = vmul.f32 %v1083, %v1162
        %v1597 = vmul.f32 %v1084, %v1162
        %v1598 = vmul.f32 %v1085, %v1162
        %v1599 = vmul.f32 %v1086, %v1162
        %v1600 = vmul.f32 %v1087, %v1162
        %v1601 = vmul.f32 %v1088, %v1162
        %v1602 = vmul.f32 %v1089, %v1162
        %v1603 = vmul.f32 %v1090, %v1162
        %v1604 = vmul.f32 %v1091, %v1162
        %v1605 = vmul.f32 %v1092, %v1162
        %v1606 = vmul.f32 %v1093, %v1162
        %v1607 = vmul.f32 %v1094, %v1162
        %v1608 = vmul.f32 %v1095, %v1162
        %v1609 = vmul.f32 %v1096, %v1162
        %v1610 = vmul.f32 %v1097, %v1162
        %v1611 = vmul.f32 %v1098, %v1162
        %v1612 = vmul.f32 %v1099, %v1162
        %v1613 = vmul.f32 %v1100, %v1162
        %v1614 = vmul.f32 %v1101, %v1162
        %v1615 = vmul.f32 %v1102, %v1162
        %v1616 = vmul.f32 %v1103, %v1162
        %v1617 = vmul.f32 %v1104, %v1162
        %v1618 = vmul.f32 %v1105, %v1162
        %v1619 = vmul.f32 %v1106, %v1162
        %v1620 = vmul.f32 %v1107, %v1162
        %v1621 = vmul.f32 %v1108, %v1162
        %v1622 = vmul.f32 %v1109, %v1162
        %v1623 = vmul.f32 %v1110, %v1162
        %v1624 = vmul.f32 %v1111, %v1162
        %v1625 = vmul.f32 %v1112, %v1162
        %v1626 = vmul.f32 %v1113, %v1162
        %v1627 = vmul.f32 %v1114, %v1162
        %v1628 = vmul.f32 %v1115, %v1162
        %v1629 = vmul.f32 %v1116, %v1162
        %v1630 = vmul.f32 %v1117, %v1162
        %v1631 = vmul.f32 %v1118, %v1162
        %v1632 = vmul.f32 %v1119, %v1162
        %v1633 = vmul.f32 %v1120, %v1162
        %v1634 = vmul.f32 %v1121, %v1162
        %v1635 = vmul.f32 %v1122, %v1162
        %v1636 = vmul.f32 %v1123, %v1162
        %v1637 = vmul.f32 %v1124, %v1162
        %v1638 = vmul.f32 %v1125, %v1162
        %v1639 = vmul.f32 %v1126, %v1162
        %v1640 = vmul.f32 %v1127, %v1162
        %v1641 = vmul.f32 %v1128, %v1162
        %v1642 = vmul.f32 %v1129, %v1162
        %v1643 = vmul.f32 %v1130, %v1162
        %v1644 = vmul.f32 %v1131, %v1162
        %v1645 = vmul.f32 %v1132, %v1162
        %v1646 = vmul.f32 %v1133, %v1162
        %v1647 = vmul.f32 %v1134, %v1162
        %v1648 = vmul.f32 %v1135, %v1162
        %v1649 = vmul.f32 %v1136, %v1162
        %v1650 = vmul.f32 %v1137, %v1162
        %v1651 = vmul.f32 %v1138, %v1162
        %v1652 = vmul.f32 %v1139, %v1162
        %v1653 = vmul.f32 %v1140, %v1162
        %v1654 = vmul.f32 %v1141, %v1162
        %v1655 = vmul.f32 %v1142, %v1162
        %v1656 = vmul.f32 %v1143, %v1162
        %v1657 = vmul.f32 %v1144, %v1162
        %v1658 = vmul.f32 %v1145, %v1162
        %v1659 = vmul.f32 %v1146, %v1162
        %v1660 = vmul.f32 %v1147, %v1162
        %v1661 = vmul.f32 %v1148, %v1162
        %v1662 = vmul.f32 %v1149, %v1162
        %v1663 = vmul.f32 %v1150, %v1162
        %v1664 = vmul.f32 %v1151, %v1162
        %v1665 = vmul.f32 %v1152, %v1162
        %v1666 = vmul.f32 %v1153, %v1162
        %v1667 = vmul.f32 %v1154, %v1162
        %v1668 = vmul.f32 %v1155, %v1162
        %v1669 = vmul.f32 %v1156, %v1162
        %v1670 = vmul.f32 %v1157, %v1162
        %v1671 = vmul.f32 %v1158, %v1162
        %v1672 = vmul.f32 %v1159, %v1162
        %v1673 = vmul.f32 %v1160, %v1162
        %v1674 = vmul.f32 %v1161, %v1162
        %1675 = vst [vmem:[%s135] sm:$0xff] %v1163
        %1676 = vst [vmem:[%s135 + $0x8] sm:$0xff] %v1164
        %1677 = vst [vmem:[%s135 + $0x10] sm:$0xff] %v1165
        %1678 = vst [vmem:[%s135 + $0x18] sm:$0xff] %v1166
        %1679 = vst [vmem:[%s135 + $0x20] sm:$0xff] %v1167
        %1680 = vst [vmem:[%s135 + $0x28] sm:$0xff] %v1168
        %1681 = vst [vmem:[%s135 + $0x30] sm:$0xff] %v1169
        %1682 = vst [vmem:[%s135 + $0x38] sm:$0xff] %v1170
        %1683 = vst [vmem:[%s135 + $0x40] sm:$0xff] %v1171
        %1684 = vst [vmem:[%s135 + $0x48] sm:$0xff] %v1172
        %1685 = vst [vmem:[%s135 + $0x50] sm:$0xff] %v1173
        %1686 = vst [vmem:[%s135 + $0x58] sm:$0xff] %v1174
        %1687 = vst [vmem:[%s135 + $0x60] sm:$0xff] %v1175
        %1688 = vst [vmem:[%s135 + $0x68] sm:$0xff] %v1176
        %1689 = vst [vmem:[%s135 + $0x70] sm:$0xff] %v1177
        %1690 = vst [vmem:[%s135 + $0x78] sm:$0xff] %v1178
        %1691 = vst [vmem:[%s135 + $0x80] sm:$0xff] %v1179
        %1692 = vst [vmem:[%s135 + $0x88] sm:$0xff] %v1180
        %1693 = vst [vmem:[%s135 + $0x90] sm:$0xff] %v1181
        %1694 = vst [vmem:[%s135 + $0x98] sm:$0xff] %v1182
        %1695 = vst [vmem:[%s135 + $0xa0] sm:$0xff] %v1183
        %1696 = vst [vmem:[%s135 + $0xa8] sm:$0xff] %v1184
        %1697 = vst [vmem:[%s135 + $0xb0] sm:$0xff] %v1185
        %1698 = vst [vmem:[%s135 + $0xb8] sm:$0xff] %v1186
        %1699 = vst [vmem:[%s135 + $0xc0] sm:$0xff] %v1187
        %1700 = vst [vmem:[%s135 + $0xc8] sm:$0xff] %v1188
        %1701 = vst [vmem:[%s135 + $0xd0] sm:$0xff] %v1189
        %1702 = vst [vmem:[%s135 + $0xd8] sm:$0xff] %v1190
        %1703 = vst [vmem:[%s135 + $0xe0] sm:$0xff] %v1191
        %1704 = vst [vmem:[%s135 + $0xe8] sm:$0xff] %v1192
        %1705 = vst [vmem:[%s135 + $0xf0] sm:$0xff] %v1193
        %1706 = vst [vmem:[%s135 + $0xf8] sm:$0xff] %v1194
        %1707 = vst [vmem:[%s135 + $0x100] sm:$0xff] %v1195
        %1708 = vst [vmem:[%s135 + $0x108] sm:$0xff] %v1196
        %1709 = vst [vmem:[%s135 + $0x110] sm:$0xff] %v1197
        %1710 = vst [vmem:[%s135 + $0x118] sm:$0xff] %v1198
        %1711 = vst [vmem:[%s135 + $0x120] sm:$0xff] %v1199
        %1712 = vst [vmem:[%s135 + $0x128] sm:$0xff] %v1200
        %1713 = vst [vmem:[%s135 + $0x130] sm:$0xff] %v1201
        %1714 = vst [vmem:[%s135 + $0x138] sm:$0xff] %v1202
        %1715 = vst [vmem:[%s135 + $0x140] sm:$0xff] %v1203
        %1716 = vst [vmem:[%s135 + $0x148] sm:$0xff] %v1204
        %1717 = vst [vmem:[%s135 + $0x150] sm:$0xff] %v1205
        %1718 = vst [vmem:[%s135 + $0x158] sm:$0xff] %v1206
        %1719 = vst [vmem:[%s135 + $0x160] sm:$0xff] %v1207
        %1720 = vst [vmem:[%s135 + $0x168] sm:$0xff] %v1208
        %1721 = vst [vmem:[%s135 + $0x170] sm:$0xff] %v1209
        %1722 = vst [vmem:[%s135 + $0x178] sm:$0xff] %v1210
        %1723 = vst [vmem:[%s135 + $0x180] sm:$0xff] %v1211
        %1724 = vst [vmem:[%s135 + $0x188] sm:$0xff] %v1212
        %1725 = vst [vmem:[%s135 + $0x190] sm:$0xff] %v1213
        %1726 = vst [vmem:[%s135 + $0x198] sm:$0xff] %v1214
        %1727 = vst [vmem:[%s135 + $0x1a0] sm:$0xff] %v1215
        %1728 = vst [vmem:[%s135 + $0x1a8] sm:$0xff] %v1216
        %1729 = vst [vmem:[%s135 + $0x1b0] sm:$0xff] %v1217
        %1730 = vst [vmem:[%s135 + $0x1b8] sm:$0xff] %v1218
        %1731 = vst [vmem:[%s135 + $0x1c0] sm:$0xff] %v1219
        %1732 = vst [vmem:[%s135 + $0x1c8] sm:$0xff] %v1220
        %1733 = vst [vmem:[%s135 + $0x1d0] sm:$0xff] %v1221
        %1734 = vst [vmem:[%s135 + $0x1d8] sm:$0xff] %v1222
        %1735 = vst [vmem:[%s135 + $0x1e0] sm:$0xff] %v1223
        %1736 = vst [vmem:[%s135 + $0x1e8] sm:$0xff] %v1224
        %1737 = vst [vmem:[%s135 + $0x1f0] sm:$0xff] %v1225
        %1738 = vst [vmem:[%s135 + $0x1f8] sm:$0xff] %v1226
        %1739 = vst [vmem:[%s135 + $0x200] sm:$0xff] %v1227
        %1740 = vst [vmem:[%s135 + $0x208] sm:$0xff] %v1228
        %1741 = vst [vmem:[%s135 + $0x210] sm:$0xff] %v1229
        %1742 = vst [vmem:[%s135 + $0x218] sm:$0xff] %v1230
        %1743 = vst [vmem:[%s135 + $0x220] sm:$0xff] %v1231
        %1744 = vst [vmem:[%s135 + $0x228] sm:$0xff] %v1232
        %1745 = vst [vmem:[%s135 + $0x230] sm:$0xff] %v1233
        %1746 = vst [vmem:[%s135 + $0x238] sm:$0xff] %v1234
        %1747 = vst [vmem:[%s135 + $0x240] sm:$0xff] %v1235
        %1748 = vst [vmem:[%s135 + $0x248] sm:$0xff] %v1236
        %1749 = vst [vmem:[%s135 + $0x250] sm:$0xff] %v1237
        %1750 = vst [vmem:[%s135 + $0x258] sm:$0xff] %v1238
        %1751 = vst [vmem:[%s135 + $0x260] sm:$0xff] %v1239
        %1752 = vst [vmem:[%s135 + $0x268] sm:$0xff] %v1240
        %1753 = vst [vmem:[%s135 + $0x270] sm:$0xff] %v1241
        %1754 = vst [vmem:[%s135 + $0x278] sm:$0xff] %v1242
        %1755 = vst [vmem:[%s135 + $0x280] sm:$0xff] %v1243
        %1756 = vst [vmem:[%s135 + $0x288] sm:$0xff] %v1244
        %1757 = vst [vmem:[%s135 + $0x290] sm:$0xff] %v1245
        %1758 = vst [vmem:[%s135 + $0x298] sm:$0xff] %v1246
        %1759 = vst [vmem:[%s135 + $0x2a0] sm:$0xff] %v1247
        %1760 = vst [vmem:[%s135 + $0x2a8] sm:$0xff] %v1248
        %1761 = vst [vmem:[%s135 + $0x2b0] sm:$0xff] %v1249
        %1762 = vst [vmem:[%s135 + $0x2b8] sm:$0xff] %v1250
        %1763 = vst [vmem:[%s135 + $0x2c0] sm:$0xff] %v1251
        %1764 = vst [vmem:[%s135 + $0x2c8] sm:$0xff] %v1252
        %1765 = vst [vmem:[%s135 + $0x2d0] sm:$0xff] %v1253
        %1766 = vst [vmem:[%s135 + $0x2d8] sm:$0xff] %v1254
        %1767 = vst [vmem:[%s135 + $0x2e0] sm:$0xff] %v1255
        %1768 = vst [vmem:[%s135 + $0x2e8] sm:$0xff] %v1256
        %1769 = vst [vmem:[%s135 + $0x2f0] sm:$0xff] %v1257
        %1770 = vst [vmem:[%s135 + $0x2f8] sm:$0xff] %v1258
        %1771 = vst [vmem:[%s135 + $0x300] sm:$0xff] %v1259
        %1772 = vst [vmem:[%s135 + $0x308] sm:$0xff] %v1260
        %1773 = vst [vmem:[%s135 + $0x310] sm:$0xff] %v1261
        %1774 = vst [vmem:[%s135 + $0x318] sm:$0xff] %v1262
        %1775 = vst [vmem:[%s135 + $0x320] sm:$0xff] %v1263
        %1776 = vst [vmem:[%s135 + $0x328] sm:$0xff] %v1264
        %1777 = vst [vmem:[%s135 + $0x330] sm:$0xff] %v1265
        %1778 = vst [vmem:[%s135 + $0x338] sm:$0xff] %v1266
        %1779 = vst [vmem:[%s135 + $0x340] sm:$0xff] %v1267
        %1780 = vst [vmem:[%s135 + $0x348] sm:$0xff] %v1268
        %1781 = vst [vmem:[%s135 + $0x350] sm:$0xff] %v1269
        %1782 = vst [vmem:[%s135 + $0x358] sm:$0xff] %v1270
        %1783 = vst [vmem:[%s135 + $0x360] sm:$0xff] %v1271
        %1784 = vst [vmem:[%s135 + $0x368] sm:$0xff] %v1272
        %1785 = vst [vmem:[%s135 + $0x370] sm:$0xff] %v1273
        %1786 = vst [vmem:[%s135 + $0x378] sm:$0xff] %v1274
        %1787 = vst [vmem:[%s135 + $0x380] sm:$0xff] %v1275
        %1788 = vst [vmem:[%s135 + $0x388] sm:$0xff] %v1276
        %1789 = vst [vmem:[%s135 + $0x390] sm:$0xff] %v1277
        %1790 = vst [vmem:[%s135 + $0x398] sm:$0xff] %v1278
        %1791 = vst [vmem:[%s135 + $0x3a0] sm:$0xff] %v1279
        %1792 = vst [vmem:[%s135 + $0x3a8] sm:$0xff] %v1280
        %1793 = vst [vmem:[%s135 + $0x3b0] sm:$0xff] %v1281
        %1794 = vst [vmem:[%s135 + $0x3b8] sm:$0xff] %v1282
        %1795 = vst [vmem:[%s135 + $0x3c0] sm:$0xff] %v1283
        %1796 = vst [vmem:[%s135 + $0x3c8] sm:$0xff] %v1284
        %1797 = vst [vmem:[%s135 + $0x3d0] sm:$0xff] %v1285
        %1798 = vst [vmem:[%s135 + $0x3d8] sm:$0xff] %v1286
        %1799 = vst [vmem:[%s135 + $0x3e0] sm:$0xff] %v1287
        %1800 = vst [vmem:[%s135 + $0x3e8] sm:$0xff] %v1288
        %1801 = vst [vmem:[%s135 + $0x3f0] sm:$0xff] %v1289
        %1802 = vst [vmem:[%s135 + $0x3f8] sm:$0xff] %v1290
        %1803 = vst [vmem:[%s135 + $0x400] sm:$0xff] %v1291
        %1804 = vst [vmem:[%s135 + $0x408] sm:$0xff] %v1292
        %1805 = vst [vmem:[%s135 + $0x410] sm:$0xff] %v1293
        %1806 = vst [vmem:[%s135 + $0x418] sm:$0xff] %v1294
        %1807 = vst [vmem:[%s135 + $0x420] sm:$0xff] %v1295
        %1808 = vst [vmem:[%s135 + $0x428] sm:$0xff] %v1296
        %1809 = vst [vmem:[%s135 + $0x430] sm:$0xff] %v1297
        %1810 = vst [vmem:[%s135 + $0x438] sm:$0xff] %v1298
        %1811 = vst [vmem:[%s135 + $0x440] sm:$0xff] %v1299
        %1812 = vst [vmem:[%s135 + $0x448] sm:$0xff] %v1300
        %1813 = vst [vmem:[%s135 + $0x450] sm:$0xff] %v1301
        %1814 = vst [vmem:[%s135 + $0x458] sm:$0xff] %v1302
        %1815 = vst [vmem:[%s135 + $0x460] sm:$0xff] %v1303
        %1816 = vst [vmem:[%s135 + $0x468] sm:$0xff] %v1304
        %1817 = vst [vmem:[%s135 + $0x470] sm:$0xff] %v1305
        %1818 = vst [vmem:[%s135 + $0x478] sm:$0xff] %v1306
        %1819 = vst [vmem:[%s135 + $0x480] sm:$0xff] %v1307
        %1820 = vst [vmem:[%s135 + $0x488] sm:$0xff] %v1308
        %1821 = vst [vmem:[%s135 + $0x490] sm:$0xff] %v1309
        %1822 = vst [vmem:[%s135 + $0x498] sm:$0xff] %v1310
        %1823 = vst [vmem:[%s135 + $0x4a0] sm:$0xff] %v1311
        %1824 = vst [vmem:[%s135 + $0x4a8] sm:$0xff] %v1312
        %1825 = vst [vmem:[%s135 + $0x4b0] sm:$0xff] %v1313
        %1826 = vst [vmem:[%s135 + $0x4b8] sm:$0xff] %v1314
        %1827 = vst [vmem:[%s135 + $0x4c0] sm:$0xff] %v1315
        %1828 = vst [vmem:[%s135 + $0x4c8] sm:$0xff] %v1316
        %1829 = vst [vmem:[%s135 + $0x4d0] sm:$0xff] %v1317
        %1830 = vst [vmem:[%s135 + $0x4d8] sm:$0xff] %v1318
        %1831 = vst [vmem:[%s135 + $0x4e0] sm:$0xff] %v1319
        %1832 = vst [vmem:[%s135 + $0x4e8] sm:$0xff] %v1320
        %1833 = vst [vmem:[%s135 + $0x4f0] sm:$0xff] %v1321
        %1834 = vst [vmem:[%s135 + $0x4f8] sm:$0xff] %v1322
        %1835 = vst [vmem:[%s135 + $0x500] sm:$0xff] %v1323
        %1836 = vst [vmem:[%s135 + $0x508] sm:$0xff] %v1324
        %1837 = vst [vmem:[%s135 + $0x510] sm:$0xff] %v1325
        %1838 = vst [vmem:[%s135 + $0x518] sm:$0xff] %v1326
        %1839 = vst [vmem:[%s135 + $0x520] sm:$0xff] %v1327
        %1840 = vst [vmem:[%s135 + $0x528] sm:$0xff] %v1328
        %1841 = vst [vmem:[%s135 + $0x530] sm:$0xff] %v1329
        %1842 = vst [vmem:[%s135 + $0x538] sm:$0xff] %v1330
        %1843 = vst [vmem:[%s135 + $0x540] sm:$0xff] %v1331
        %1844 = vst [vmem:[%s135 + $0x548] sm:$0xff] %v1332
        %1845 = vst [vmem:[%s135 + $0x550] sm:$0xff] %v1333
        %1846 = vst [vmem:[%s135 + $0x558] sm:$0xff] %v1334
        %1847 = vst [vmem:[%s135 + $0x560] sm:$0xff] %v1335
        %1848 = vst [vmem:[%s135 + $0x568] sm:$0xff] %v1336
        %1849 = vst [vmem:[%s135 + $0x570] sm:$0xff] %v1337
        %1850 = vst [vmem:[%s135 + $0x578] sm:$0xff] %v1338
        %1851 = vst [vmem:[%s135 + $0x580] sm:$0xff] %v1339
        %1852 = vst [vmem:[%s135 + $0x588] sm:$0xff] %v1340
        %1853 = vst [vmem:[%s135 + $0x590] sm:$0xff] %v1341
        %1854 = vst [vmem:[%s135 + $0x598] sm:$0xff] %v1342
        %1855 = vst [vmem:[%s135 + $0x5a0] sm:$0xff] %v1343
        %1856 = vst [vmem:[%s135 + $0x5a8] sm:$0xff] %v1344
        %1857 = vst [vmem:[%s135 + $0x5b0] sm:$0xff] %v1345
        %1858 = vst [vmem:[%s135 + $0x5b8] sm:$0xff] %v1346
        %1859 = vst [vmem:[%s135 + $0x5c0] sm:$0xff] %v1347
        %1860 = vst [vmem:[%s135 + $0x5c8] sm:$0xff] %v1348
        %1861 = vst [vmem:[%s135 + $0x5d0] sm:$0xff] %v1349
        %1862 = vst [vmem:[%s135 + $0x5d8] sm:$0xff] %v1350
        %1863 = vst [vmem:[%s135 + $0x5e0] sm:$0xff] %v1351
        %1864 = vst [vmem:[%s135 + $0x5e8] sm:$0xff] %v1352
        %1865 = vst [vmem:[%s135 + $0x5f0] sm:$0xff] %v1353
        %1866 = vst [vmem:[%s135 + $0x5f8] sm:$0xff] %v1354
        %1867 = vst [vmem:[%s135 + $0x600] sm:$0xff] %v1355
        %1868 = vst [vmem:[%s135 + $0x608] sm:$0xff] %v1356
        %1869 = vst [vmem:[%s135 + $0x610] sm:$0xff] %v1357
        %1870 = vst [vmem:[%s135 + $0x618] sm:$0xff] %v1358
        %1871 = vst [vmem:[%s135 + $0x620] sm:$0xff] %v1359
        %1872 = vst [vmem:[%s135 + $0x628] sm:$0xff] %v1360
        %1873 = vst [vmem:[%s135 + $0x630] sm:$0xff] %v1361
        %1874 = vst [vmem:[%s135 + $0x638] sm:$0xff] %v1362
        %1875 = vst [vmem:[%s135 + $0x640] sm:$0xff] %v1363
        %1876 = vst [vmem:[%s135 + $0x648] sm:$0xff] %v1364
        %1877 = vst [vmem:[%s135 + $0x650] sm:$0xff] %v1365
        %1878 = vst [vmem:[%s135 + $0x658] sm:$0xff] %v1366
        %1879 = vst [vmem:[%s135 + $0x660] sm:$0xff] %v1367
        %1880 = vst [vmem:[%s135 + $0x668] sm:$0xff] %v1368
        %1881 = vst [vmem:[%s135 + $0x670] sm:$0xff] %v1369
        %1882 = vst [vmem:[%s135 + $0x678] sm:$0xff] %v1370
        %1883 = vst [vmem:[%s135 + $0x680] sm:$0xff] %v1371
        %1884 = vst [vmem:[%s135 + $0x688] sm:$0xff] %v1372
        %1885 = vst [vmem:[%s135 + $0x690] sm:$0xff] %v1373
        %1886 = vst [vmem:[%s135 + $0x698] sm:$0xff] %v1374
        %1887 = vst [vmem:[%s135 + $0x6a0] sm:$0xff] %v1375
        %1888 = vst [vmem:[%s135 + $0x6a8] sm:$0xff] %v1376
        %1889 = vst [vmem:[%s135 + $0x6b0] sm:$0xff] %v1377
        %1890 = vst [vmem:[%s135 + $0x6b8] sm:$0xff] %v1378
        %1891 = vst [vmem:[%s135 + $0x6c0] sm:$0xff] %v1379
        %1892 = vst [vmem:[%s135 + $0x6c8] sm:$0xff] %v1380
        %1893 = vst [vmem:[%s135 + $0x6d0] sm:$0xff] %v1381
        %1894 = vst [vmem:[%s135 + $0x6d8] sm:$0xff] %v1382
        %1895 = vst [vmem:[%s135 + $0x6e0] sm:$0xff] %v1383
        %1896 = vst [vmem:[%s135 + $0x6e8] sm:$0xff] %v1384
        %1897 = vst [vmem:[%s135 + $0x6f0] sm:$0xff] %v1385
        %1898 = vst [vmem:[%s135 + $0x6f8] sm:$0xff] %v1386
        %1899 = vst [vmem:[%s135 + $0x700] sm:$0xff] %v1387
        %1900 = vst [vmem:[%s135 + $0x708] sm:$0xff] %v1388
        %1901 = vst [vmem:[%s135 + $0x710] sm:$0xff] %v1389
        %1902 = vst [vmem:[%s135 + $0x718] sm:$0xff] %v1390
        %1903 = vst [vmem:[%s135 + $0x720] sm:$0xff] %v1391
        %1904 = vst [vmem:[%s135 + $0x728] sm:$0xff] %v1392
        %1905 = vst [vmem:[%s135 + $0x730] sm:$0xff] %v1393
        %1906 = vst [vmem:[%s135 + $0x738] sm:$0xff] %v1394
        %1907 = vst [vmem:[%s135 + $0x740] sm:$0xff] %v1395
        %1908 = vst [vmem:[%s135 + $0x748] sm:$0xff] %v1396
        %1909 = vst [vmem:[%s135 + $0x750] sm:$0xff] %v1397
        %1910 = vst [vmem:[%s135 + $0x758] sm:$0xff] %v1398
        %1911 = vst [vmem:[%s135 + $0x760] sm:$0xff] %v1399
        %1912 = vst [vmem:[%s135 + $0x768] sm:$0xff] %v1400
        %1913 = vst [vmem:[%s135 + $0x770] sm:$0xff] %v1401
        %1914 = vst [vmem:[%s135 + $0x778] sm:$0xff] %v1402
        %1915 = vst [vmem:[%s135 + $0x780] sm:$0xff] %v1403
        %1916 = vst [vmem:[%s135 + $0x788] sm:$0xff] %v1404
        %1917 = vst [vmem:[%s135 + $0x790] sm:$0xff] %v1405
        %1918 = vst [vmem:[%s135 + $0x798] sm:$0xff] %v1406
        %1919 = vst [vmem:[%s135 + $0x7a0] sm:$0xff] %v1407
        %1920 = vst [vmem:[%s135 + $0x7a8] sm:$0xff] %v1408
        %1921 = vst [vmem:[%s135 + $0x7b0] sm:$0xff] %v1409
        %1922 = vst [vmem:[%s135 + $0x7b8] sm:$0xff] %v1410
        %1923 = vst [vmem:[%s135 + $0x7c0] sm:$0xff] %v1411
        %1924 = vst [vmem:[%s135 + $0x7c8] sm:$0xff] %v1412
        %1925 = vst [vmem:[%s135 + $0x7d0] sm:$0xff] %v1413
        %1926 = vst [vmem:[%s135 + $0x7d8] sm:$0xff] %v1414
        %1927 = vst [vmem:[%s135 + $0x7e0] sm:$0xff] %v1415
        %1928 = vst [vmem:[%s135 + $0x7e8] sm:$0xff] %v1416
        %1929 = vst [vmem:[%s135 + $0x7f0] sm:$0xff] %v1417
        %1930 = vst [vmem:[%s135 + $0x7f8] sm:$0xff] %v1418
        %1931 = vst [vmem:[%s135 + $0x800] sm:$0xff] %v1419
        %1932 = vst [vmem:[%s135 + $0x808] sm:$0xff] %v1420
        %1933 = vst [vmem:[%s135 + $0x810] sm:$0xff] %v1421
        %1934 = vst [vmem:[%s135 + $0x818] sm:$0xff] %v1422
        %1935 = vst [vmem:[%s135 + $0x820] sm:$0xff] %v1423
        %1936 = vst [vmem:[%s135 + $0x828] sm:$0xff] %v1424
        %1937 = vst [vmem:[%s135 + $0x830] sm:$0xff] %v1425
        %1938 = vst [vmem:[%s135 + $0x838] sm:$0xff] %v1426
        %1939 = vst [vmem:[%s135 + $0x840] sm:$0xff] %v1427
        %1940 = vst [vmem:[%s135 + $0x848] sm:$0xff] %v1428
        %1941 = vst [vmem:[%s135 + $0x850] sm:$0xff] %v1429
        %1942 = vst [vmem:[%s135 + $0x858] sm:$0xff] %v1430
        %1943 = vst [vmem:[%s135 + $0x860] sm:$0xff] %v1431
        %1944 = vst [vmem:[%s135 + $0x868] sm:$0xff] %v1432
        %1945 = vst [vmem:[%s135 + $0x870] sm:$0xff] %v1433
        %1946 = vst [vmem:[%s135 + $0x878] sm:$0xff] %v1434
        %1947 = vst [vmem:[%s135 + $0x880] sm:$0xff] %v1435
        %1948 = vst [vmem:[%s135 + $0x888] sm:$0xff] %v1436
        %1949 = vst [vmem:[%s135 + $0x890] sm:$0xff] %v1437
        %1950 = vst [vmem:[%s135 + $0x898] sm:$0xff] %v1438
        %1951 = vst [vmem:[%s135 + $0x8a0] sm:$0xff] %v1439
        %1952 = vst [vmem:[%s135 + $0x8a8] sm:$0xff] %v1440
        %1953 = vst [vmem:[%s135 + $0x8b0] sm:$0xff] %v1441
        %1954 = vst [vmem:[%s135 + $0x8b8] sm:$0xff] %v1442
        %1955 = vst [vmem:[%s135 + $0x8c0] sm:$0xff] %v1443
        %1956 = vst [vmem:[%s135 + $0x8c8] sm:$0xff] %v1444
        %1957 = vst [vmem:[%s135 + $0x8d0] sm:$0xff] %v1445
        %1958 = vst [vmem:[%s135 + $0x8d8] sm:$0xff] %v1446
        %1959 = vst [vmem:[%s135 + $0x8e0] sm:$0xff] %v1447
        %1960 = vst [vmem:[%s135 + $0x8e8] sm:$0xff] %v1448
        %1961 = vst [vmem:[%s135 + $0x8f0] sm:$0xff] %v1449
        %1962 = vst [vmem:[%s135 + $0x8f8] sm:$0xff] %v1450
        %1963 = vst [vmem:[%s135 + $0x900] sm:$0xff] %v1451
        %1964 = vst [vmem:[%s135 + $0x908] sm:$0xff] %v1452
        %1965 = vst [vmem:[%s135 + $0x910] sm:$0xff] %v1453
        %1966 = vst [vmem:[%s135 + $0x918] sm:$0xff] %v1454
        %1967 = vst [vmem:[%s135 + $0x920] sm:$0xff] %v1455
        %1968 = vst [vmem:[%s135 + $0x928] sm:$0xff] %v1456
        %1969 = vst [vmem:[%s135 + $0x930] sm:$0xff] %v1457
        %1970 = vst [vmem:[%s135 + $0x938] sm:$0xff] %v1458
        %1971 = vst [vmem:[%s135 + $0x940] sm:$0xff] %v1459
        %1972 = vst [vmem:[%s135 + $0x948] sm:$0xff] %v1460
        %1973 = vst [vmem:[%s135 + $0x950] sm:$0xff] %v1461
        %1974 = vst [vmem:[%s135 + $0x958] sm:$0xff] %v1462
        %1975 = vst [vmem:[%s135 + $0x960] sm:$0xff] %v1463
        %1976 = vst [vmem:[%s135 + $0x968] sm:$0xff] %v1464
        %1977 = vst [vmem:[%s135 + $0x970] sm:$0xff] %v1465
        %1978 = vst [vmem:[%s135 + $0x978] sm:$0xff] %v1466
        %1979 = vst [vmem:[%s135 + $0x980] sm:$0xff] %v1467
        %1980 = vst [vmem:[%s135 + $0x988] sm:$0xff] %v1468
        %1981 = vst [vmem:[%s135 + $0x990] sm:$0xff] %v1469
        %1982 = vst [vmem:[%s135 + $0x998] sm:$0xff] %v1470
        %1983 = vst [vmem:[%s135 + $0x9a0] sm:$0xff] %v1471
        %1984 = vst [vmem:[%s135 + $0x9a8] sm:$0xff] %v1472
        %1985 = vst [vmem:[%s135 + $0x9b0] sm:$0xff] %v1473
        %1986 = vst [vmem:[%s135 + $0x9b8] sm:$0xff] %v1474
        %1987 = vst [vmem:[%s135 + $0x9c0] sm:$0xff] %v1475
        %1988 = vst [vmem:[%s135 + $0x9c8] sm:$0xff] %v1476
        %1989 = vst [vmem:[%s135 + $0x9d0] sm:$0xff] %v1477
        %1990 = vst [vmem:[%s135 + $0x9d8] sm:$0xff] %v1478
        %1991 = vst [vmem:[%s135 + $0x9e0] sm:$0xff] %v1479
        %1992 = vst [vmem:[%s135 + $0x9e8] sm:$0xff] %v1480
        %1993 = vst [vmem:[%s135 + $0x9f0] sm:$0xff] %v1481
        %1994 = vst [vmem:[%s135 + $0x9f8] sm:$0xff] %v1482
        %1995 = vst [vmem:[%s135 + $0xa00] sm:$0xff] %v1483
        %1996 = vst [vmem:[%s135 + $0xa08] sm:$0xff] %v1484
        %1997 = vst [vmem:[%s135 + $0xa10] sm:$0xff] %v1485
        %1998 = vst [vmem:[%s135 + $0xa18] sm:$0xff] %v1486
        %1999 = vst [vmem:[%s135 + $0xa20] sm:$0xff] %v1487
        %2000 = vst [vmem:[%s135 + $0xa28] sm:$0xff] %v1488
        %2001 = vst [vmem:[%s135 + $0xa30] sm:$0xff] %v1489
        %2002 = vst [vmem:[%s135 + $0xa38] sm:$0xff] %v1490
        %2003 = vst [vmem:[%s135 + $0xa40] sm:$0xff] %v1491
        %2004 = vst [vmem:[%s135 + $0xa48] sm:$0xff] %v1492
        %2005 = vst [vmem:[%s135 + $0xa50] sm:$0xff] %v1493
        %2006 = vst [vmem:[%s135 + $0xa58] sm:$0xff] %v1494
        %2007 = vst [vmem:[%s135 + $0xa60] sm:$0xff] %v1495
        %2008 = vst [vmem:[%s135 + $0xa68] sm:$0xff] %v1496
        %2009 = vst [vmem:[%s135 + $0xa70] sm:$0xff] %v1497
        %2010 = vst [vmem:[%s135 + $0xa78] sm:$0xff] %v1498
        %2011 = vst [vmem:[%s135 + $0xa80] sm:$0xff] %v1499
        %2012 = vst [vmem:[%s135 + $0xa88] sm:$0xff] %v1500
        %2013 = vst [vmem:[%s135 + $0xa90] sm:$0xff] %v1501
        %2014 = vst [vmem:[%s135 + $0xa98] sm:$0xff] %v1502
        %2015 = vst [vmem:[%s135 + $0xaa0] sm:$0xff] %v1503
        %2016 = vst [vmem:[%s135 + $0xaa8] sm:$0xff] %v1504
        %2017 = vst [vmem:[%s135 + $0xab0] sm:$0xff] %v1505
        %2018 = vst [vmem:[%s135 + $0xab8] sm:$0xff] %v1506
        %2019 = vst [vmem:[%s135 + $0xac0] sm:$0xff] %v1507
        %2020 = vst [vmem:[%s135 + $0xac8] sm:$0xff] %v1508
        %2021 = vst [vmem:[%s135 + $0xad0] sm:$0xff] %v1509
        %2022 = vst [vmem:[%s135 + $0xad8] sm:$0xff] %v1510
        %2023 = vst [vmem:[%s135 + $0xae0] sm:$0xff] %v1511
        %2024 = vst [vmem:[%s135 + $0xae8] sm:$0xff] %v1512
        %2025 = vst [vmem:[%s135 + $0xaf0] sm:$0xff] %v1513
        %2026 = vst [vmem:[%s135 + $0xaf8] sm:$0xff] %v1514
        %2027 = vst [vmem:[%s135 + $0xb00] sm:$0xff] %v1515
        %2028 = vst [vmem:[%s135 + $0xb08] sm:$0xff] %v1516
        %2029 = vst [vmem:[%s135 + $0xb10] sm:$0xff] %v1517
        %2030 = vst [vmem:[%s135 + $0xb18] sm:$0xff] %v1518
        %2031 = vst [vmem:[%s135 + $0xb20] sm:$0xff] %v1519
        %2032 = vst [vmem:[%s135 + $0xb28] sm:$0xff] %v1520
        %2033 = vst [vmem:[%s135 + $0xb30] sm:$0xff] %v1521
        %2034 = vst [vmem:[%s135 + $0xb38] sm:$0xff] %v1522
        %2035 = vst [vmem:[%s135 + $0xb40] sm:$0xff] %v1523
        %2036 = vst [vmem:[%s135 + $0xb48] sm:$0xff] %v1524
        %2037 = vst [vmem:[%s135 + $0xb50] sm:$0xff] %v1525
        %2038 = vst [vmem:[%s135 + $0xb58] sm:$0xff] %v1526
        %2039 = vst [vmem:[%s135 + $0xb60] sm:$0xff] %v1527
        %2040 = vst [vmem:[%s135 + $0xb68] sm:$0xff] %v1528
        %2041 = vst [vmem:[%s135 + $0xb70] sm:$0xff] %v1529
        %2042 = vst [vmem:[%s135 + $0xb78] sm:$0xff] %v1530
        %2043 = vst [vmem:[%s135 + $0xb80] sm:$0xff] %v1531
        %2044 = vst [vmem:[%s135 + $0xb88] sm:$0xff] %v1532
        %2045 = vst [vmem:[%s135 + $0xb90] sm:$0xff] %v1533
        %2046 = vst [vmem:[%s135 + $0xb98] sm:$0xff] %v1534
        %2047 = vst [vmem:[%s135 + $0xba0] sm:$0xff] %v1535
        %2048 = vst [vmem:[%s135 + $0xba8] sm:$0xff] %v1536
        %2049 = vst [vmem:[%s135 + $0xbb0] sm:$0xff] %v1537
        %2050 = vst [vmem:[%s135 + $0xbb8] sm:$0xff] %v1538
        %2051 = vst [vmem:[%s135 + $0xbc0] sm:$0xff] %v1539
        %2052 = vst [vmem:[%s135 + $0xbc8] sm:$0xff] %v1540
        %2053 = vst [vmem:[%s135 + $0xbd0] sm:$0xff] %v1541
        %2054 = vst [vmem:[%s135 + $0xbd8] sm:$0xff] %v1542
        %2055 = vst [vmem:[%s135 + $0xbe0] sm:$0xff] %v1543
        %2056 = vst [vmem:[%s135 + $0xbe8] sm:$0xff] %v1544
        %2057 = vst [vmem:[%s135 + $0xbf0] sm:$0xff] %v1545
        %2058 = vst [vmem:[%s135 + $0xbf8] sm:$0xff] %v1546
        %2059 = vst [vmem:[%s135 + $0xc00] sm:$0xff] %v1547
        %2060 = vst [vmem:[%s135 + $0xc08] sm:$0xff] %v1548
        %2061 = vst [vmem:[%s135 + $0xc10] sm:$0xff] %v1549
        %2062 = vst [vmem:[%s135 + $0xc18] sm:$0xff] %v1550
        %2063 = vst [vmem:[%s135 + $0xc20] sm:$0xff] %v1551
        %2064 = vst [vmem:[%s135 + $0xc28] sm:$0xff] %v1552
        %2065 = vst [vmem:[%s135 + $0xc30] sm:$0xff] %v1553
        %2066 = vst [vmem:[%s135 + $0xc38] sm:$0xff] %v1554
        %2067 = vst [vmem:[%s135 + $0xc40] sm:$0xff] %v1555
        %2068 = vst [vmem:[%s135 + $0xc48] sm:$0xff] %v1556
        %2069 = vst [vmem:[%s135 + $0xc50] sm:$0xff] %v1557
        %2070 = vst [vmem:[%s135 + $0xc58] sm:$0xff] %v1558
        %2071 = vst [vmem:[%s135 + $0xc60] sm:$0xff] %v1559
        %2072 = vst [vmem:[%s135 + $0xc68] sm:$0xff] %v1560
        %2073 = vst [vmem:[%s135 + $0xc70] sm:$0xff] %v1561
        %2074 = vst [vmem:[%s135 + $0xc78] sm:$0xff] %v1562
        %2075 = vst [vmem:[%s135 + $0xc80] sm:$0xff] %v1563
        %2076 = vst [vmem:[%s135 + $0xc88] sm:$0xff] %v1564
        %2077 = vst [vmem:[%s135 + $0xc90] sm:$0xff] %v1565
        %2078 = vst [vmem:[%s135 + $0xc98] sm:$0xff] %v1566
        %2079 = vst [vmem:[%s135 + $0xca0] sm:$0xff] %v1567
        %2080 = vst [vmem:[%s135 + $0xca8] sm:$0xff] %v1568
        %2081 = vst [vmem:[%s135 + $0xcb0] sm:$0xff] %v1569
        %2082 = vst [vmem:[%s135 + $0xcb8] sm:$0xff] %v1570
        %2083 = vst [vmem:[%s135 + $0xcc0] sm:$0xff] %v1571
        %2084 = vst [vmem:[%s135 + $0xcc8] sm:$0xff] %v1572
        %2085 = vst [vmem:[%s135 + $0xcd0] sm:$0xff] %v1573
        %2086 = vst [vmem:[%s135 + $0xcd8] sm:$0xff] %v1574
        %2087 = vst [vmem:[%s135 + $0xce0] sm:$0xff] %v1575
        %2088 = vst [vmem:[%s135 + $0xce8] sm:$0xff] %v1576
        %2089 = vst [vmem:[%s135 + $0xcf0] sm:$0xff] %v1577
        %2090 = vst [vmem:[%s135 + $0xcf8] sm:$0xff] %v1578
        %2091 = vst [vmem:[%s135 + $0xd00] sm:$0xff] %v1579
        %2092 = vst [vmem:[%s135 + $0xd08] sm:$0xff] %v1580
        %2093 = vst [vmem:[%s135 + $0xd10] sm:$0xff] %v1581
        %2094 = vst [vmem:[%s135 + $0xd18] sm:$0xff] %v1582
        %2095 = vst [vmem:[%s135 + $0xd20] sm:$0xff] %v1583
        %2096 = vst [vmem:[%s135 + $0xd28] sm:$0xff] %v1584
        %2097 = vst [vmem:[%s135 + $0xd30] sm:$0xff] %v1585
        %2098 = vst [vmem:[%s135 + $0xd38] sm:$0xff] %v1586
        %2099 = vst [vmem:[%s135 + $0xd40] sm:$0xff] %v1587
        %2100 = vst [vmem:[%s135 + $0xd48] sm:$0xff] %v1588
        %2101 = vst [vmem:[%s135 + $0xd50] sm:$0xff] %v1589
        %2102 = vst [vmem:[%s135 + $0xd58] sm:$0xff] %v1590
        %2103 = vst [vmem:[%s135 + $0xd60] sm:$0xff] %v1591
        %2104 = vst [vmem:[%s135 + $0xd68] sm:$0xff] %v1592
        %2105 = vst [vmem:[%s135 + $0xd70] sm:$0xff] %v1593
        %2106 = vst [vmem:[%s135 + $0xd78] sm:$0xff] %v1594
        %2107 = vst [vmem:[%s135 + $0xd80] sm:$0xff] %v1595
        %2108 = vst [vmem:[%s135 + $0xd88] sm:$0xff] %v1596
        %2109 = vst [vmem:[%s135 + $0xd90] sm:$0xff] %v1597
        %2110 = vst [vmem:[%s135 + $0xd98] sm:$0xff] %v1598
        %2111 = vst [vmem:[%s135 + $0xda0] sm:$0xff] %v1599
        %2112 = vst [vmem:[%s135 + $0xda8] sm:$0xff] %v1600
        %2113 = vst [vmem:[%s135 + $0xdb0] sm:$0xff] %v1601
        %2114 = vst [vmem:[%s135 + $0xdb8] sm:$0xff] %v1602
        %2115 = vst [vmem:[%s135 + $0xdc0] sm:$0xff] %v1603
        %2116 = vst [vmem:[%s135 + $0xdc8] sm:$0xff] %v1604
        %2117 = vst [vmem:[%s135 + $0xdd0] sm:$0xff] %v1605
        %2118 = vst [vmem:[%s135 + $0xdd8] sm:$0xff] %v1606
        %2119 = vst [vmem:[%s135 + $0xde0] sm:$0xff] %v1607
        %2120 = vst [vmem:[%s135 + $0xde8] sm:$0xff] %v1608
        %2121 = vst [vmem:[%s135 + $0xdf0] sm:$0xff] %v1609
        %2122 = vst [vmem:[%s135 + $0xdf8] sm:$0xff] %v1610
        %2123 = vst [vmem:[%s135 + $0xe00] sm:$0xff] %v1611
        %2124 = vst [vmem:[%s135 + $0xe08] sm:$0xff] %v1612
        %2125 = vst [vmem:[%s135 + $0xe10] sm:$0xff] %v1613
        %2126 = vst [vmem:[%s135 + $0xe18] sm:$0xff] %v1614
        %2127 = vst [vmem:[%s135 + $0xe20] sm:$0xff] %v1615
        %2128 = vst [vmem:[%s135 + $0xe28] sm:$0xff] %v1616
        %2129 = vst [vmem:[%s135 + $0xe30] sm:$0xff] %v1617
        %2130 = vst [vmem:[%s135 + $0xe38] sm:$0xff] %v1618
        %2131 = vst [vmem:[%s135 + $0xe40] sm:$0xff] %v1619
        %2132 = vst [vmem:[%s135 + $0xe48] sm:$0xff] %v1620
        %2133 = vst [vmem:[%s135 + $0xe50] sm:$0xff] %v1621
        %2134 = vst [vmem:[%s135 + $0xe58] sm:$0xff] %v1622
        %2135 = vst [vmem:[%s135 + $0xe60] sm:$0xff] %v1623
        %2136 = vst [vmem:[%s135 + $0xe68] sm:$0xff] %v1624
        %2137 = vst [vmem:[%s135 + $0xe70] sm:$0xff] %v1625
        %2138 = vst [vmem:[%s135 + $0xe78] sm:$0xff] %v1626
        %2139 = vst [vmem:[%s135 + $0xe80] sm:$0xff] %v1627
        %2140 = vst [vmem:[%s135 + $0xe88] sm:$0xff] %v1628
        %2141 = vst [vmem:[%s135 + $0xe90] sm:$0xff] %v1629
        %2142 = vst [vmem:[%s135 + $0xe98] sm:$0xff] %v1630
        %2143 = vst [vmem:[%s135 + $0xea0] sm:$0xff] %v1631
        %2144 = vst [vmem:[%s135 + $0xea8] sm:$0xff] %v1632
        %2145 = vst [vmem:[%s135 + $0xeb0] sm:$0xff] %v1633
        %2146 = vst [vmem:[%s135 + $0xeb8] sm:$0xff] %v1634
        %2147 = vst [vmem:[%s135 + $0xec0] sm:$0xff] %v1635
        %2148 = vst [vmem:[%s135 + $0xec8] sm:$0xff] %v1636
        %2149 = vst [vmem:[%s135 + $0xed0] sm:$0xff] %v1637
        %2150 = vst [vmem:[%s135 + $0xed8] sm:$0xff] %v1638
        %2151 = vst [vmem:[%s135 + $0xee0] sm:$0xff] %v1639
        %2152 = vst [vmem:[%s135 + $0xee8] sm:$0xff] %v1640
        %2153 = vst [vmem:[%s135 + $0xef0] sm:$0xff] %v1641
        %2154 = vst [vmem:[%s135 + $0xef8] sm:$0xff] %v1642
        %2155 = vst [vmem:[%s135 + $0xf00] sm:$0xff] %v1643
        %2156 = vst [vmem:[%s135 + $0xf08] sm:$0xff] %v1644
        %2157 = vst [vmem:[%s135 + $0xf10] sm:$0xff] %v1645
        %2158 = vst [vmem:[%s135 + $0xf18] sm:$0xff] %v1646
        %2159 = vst [vmem:[%s135 + $0xf20] sm:$0xff] %v1647
        %2160 = vst [vmem:[%s135 + $0xf28] sm:$0xff] %v1648
        %2161 = vst [vmem:[%s135 + $0xf30] sm:$0xff] %v1649
        %2162 = vst [vmem:[%s135 + $0xf38] sm:$0xff] %v1650
        %2163 = vst [vmem:[%s135 + $0xf40] sm:$0xff] %v1651
        %2164 = vst [vmem:[%s135 + $0xf48] sm:$0xff] %v1652
        %2165 = vst [vmem:[%s135 + $0xf50] sm:$0xff] %v1653
        %2166 = vst [vmem:[%s135 + $0xf58] sm:$0xff] %v1654
        %2167 = vst [vmem:[%s135 + $0xf60] sm:$0xff] %v1655
        %2168 = vst [vmem:[%s135 + $0xf68] sm:$0xff] %v1656
        %2169 = vst [vmem:[%s135 + $0xf70] sm:$0xff] %v1657
        %2170 = vst [vmem:[%s135 + $0xf78] sm:$0xff] %v1658
        %2171 = vst [vmem:[%s135 + $0xf80] sm:$0xff] %v1659
        %2172 = vst [vmem:[%s135 + $0xf88] sm:$0xff] %v1660
        %2173 = vst [vmem:[%s135 + $0xf90] sm:$0xff] %v1661
        %2174 = vst [vmem:[%s135 + $0xf98] sm:$0xff] %v1662
        %2175 = vst [vmem:[%s135 + $0xfa0] sm:$0xff] %v1663
        %2176 = vst [vmem:[%s135 + $0xfa8] sm:$0xff] %v1664
        %2177 = vst [vmem:[%s135 + $0xfb0] sm:$0xff] %v1665
        %2178 = vst [vmem:[%s135 + $0xfb8] sm:$0xff] %v1666
        %2179 = vst [vmem:[%s135 + $0xfc0] sm:$0xff] %v1667
        %2180 = vst [vmem:[%s135 + $0xfc8] sm:$0xff] %v1668
        %2181 = vst [vmem:[%s135 + $0xfd0] sm:$0xff] %v1669
        %2182 = vst [vmem:[%s135 + $0xfd8] sm:$0xff] %v1670
        %2183 = vst [vmem:[%s135 + $0xfe0] sm:$0xff] %v1671
        %2184 = vst [vmem:[%s135 + $0xfe8] sm:$0xff] %v1672
        %2185 = vst [vmem:[%s135 + $0xff0] sm:$0xff] %v1673
        %2186 = vst [vmem:[%s135 + $0xff8] sm:$0xff] %v1674
        %s2187 = sand.u32 %s52, 1
        %s2188 = scalar_lea.sflag [#allocation4], %s2187
        %s2189 = sand.u32 %s52, 1
        %s2190 = smul.addr %s2189, 4096
        %s2191 = scalar_lea.vmem [#allocation5], %s2190
        // Predicated region
        $region29: #{tpu_custom_call.1} parent=23 // pred_check
          %p2192 = pneg %p62
        $region30: #{tpu_custom_call.1} parent=23 // pred_check_branch
          %2194 = sbr.rel (%p2192) target = $region32
        $region31: #{tpu_custom_call.1} parent=23 // pred_region
          %s2195 = smul.u32 64, %s18
          %s2197 = ssub.s32 65536, 65536
          %2198 = vsyncadd %s2188, %s2197
          %s2199 = smul.addr %s2195, 8
          %s2200 = smul.addr %s2199, 128
          %s2201 = scalar_lea.hbm %s1, %s2200
          %s2202 = sshll.u32 %s2191, 4
          %s2203 = int_to_ptr.vmem [resolvable:$true] %s2202
          %2208 = dma.vmem_to_hbm [thread:$0]  %s2203, 65536, %s2201, %s2188, 1024, 1024, 64
        $region32: #{tpu_custom_call.1} parent=23 // pred_fallthru
          _
      $region24: #{tpu_custom_call.1} parent=5 // pred_fallthru
        _
      %p2209 = scmp.le.s32.totalorder 2, %s13
      // Predicated region
      $region33: #{tpu_custom_call.1} parent=5 // pred_check
        %p2210 = pneg %p2209
      $region34: #{tpu_custom_call.1} parent=5 // pred_check_branch
        %2212 = sbr.rel (%p2210) target = $region36
      $region35: #{tpu_custom_call.1} parent=5 // pred_region
        %s2213 = ssub.s32 %s13, 2
        // Predicated region
        $region37: #{tpu_custom_call.1} parent=35 // pred_check
          %p2214 = pneg %p68
        $region38: #{tpu_custom_call.1} parent=35 // pred_check_branch
          %2216 = sbr.rel (%p2214) target = $region40
        $region39: #{tpu_custom_call.1} parent=35 // pred_region
          %s2217 = sand.u32 %s53, 1
          %s2218 = scalar_lea.sflag [#allocation4], %s2217
          %s2219 = sand.u32 %s53, 1
          %s2220 = smul.addr %s2219, 4096
          %s2221 = scalar_lea.vmem [#allocation5], %s2220
          %2222 = dma.done %s2218, 65536
        $region40: #{tpu_custom_call.1} parent=35 // pred_fallthru
          _
      $region36: #{tpu_custom_call.1} parent=5 // pred_fallthru
        _
    $region6: #{tpu_custom_call.1} parent=1 // loop_footer
      %s17 = sadd.s32 1, %s13
    $region7: #{tpu_custom_call.1} parent=1 // loop_footer_branch
      %12 = sbr.rel target = $region3
    $region8: #{tpu_custom_call.1} parent=1 // loop_exit
      _
    %2223 = vsyncpa [#allocation3], 1
    %s2224 = scalar_lea.sflag [#allocation3], 1
    %2225 = vsyncpa %s2224, 1
    %2226 = vsyncpa [#allocation4], 1
    %s2227 = scalar_lea.sflag [#allocation4], 1
    %2228 = vsyncpa %s2227, 1

</llo_original>
